<compile_context>
chip_gen: v7x
topology: tpu7x:2x2x1
jax: 0.10.0
libtpu: 0.0.40
codegen_flags: <defaults>
</compile_context>

<pallas_src>
import math

import jax
import jax.numpy as jnp
from jax.experimental import pallas as pl
from jax.experimental.pallas import tpu as pltpu


def _param_uni_attn_kernel(w_ref, hyp_ref, mask_ref, out_ref):
    # w_ref:    (1, D)      shared parameter row (same block every grid step)
    # hyp_ref:  (BB, S, D)  hypothesis block (caller dtype, e.g. f32 / bf16)
    # mask_ref: (BB, 1, S)  hypothesis mask block (f32, lane-dense over S)
    # out_ref:  (BB, D)     attended premise block (dense sublane x lane tiles)
    bb, _, d = hyp_ref.shape
    inv_sqrt_d = 1.0 / math.sqrt(d)

    hyp = hyp_ref[...]                                      # keep caller dtype
    w = jnp.broadcast_to(w_ref[...].astype(hyp.dtype)[None, :, :], (bb, 1, d))
    mask = mask_ref[...]                                    # (BB, 1, S) f32

    # premise . hyp_s / sqrt(D): batched MXU matmul (M = 1), f32 accumulation,
    # lane-dense (S on lanes) result.  No full-tile f32 temporary.
    scores = jnp.einsum("bqd,bkd->bqk", w, hyp,
                        preferred_element_type=jnp.float32) * inv_sqrt_d

    # ESIM masked softmax (multiplicative mask) with the re-mask + renormalize
    # fused into one denominator:
    #     p = e*mask / (sum(e*mask) + 1e-13 * sum(e))
    # algebraically identical to softmax(scores*mask) * mask / (sum + 1e-13),
    # including the fully-masked-row case (output exactly 0).
    ms = scores * mask                                      # (BB, 1, S)
    m = jnp.max(ms, axis=-1, keepdims=True)                 # (BB, 1, 1)
    e = jnp.exp(ms - m)
    em = e * mask
    denom = (jnp.sum(em, axis=-1, keepdims=True)
             + 1e-13 * jnp.sum(e, axis=-1, keepdims=True))  # (BB, 1, 1)
    inv = pl.reciprocal(denom, approx=True)                 # EUP slot, ~free
    inv = inv * (2.0 - denom * inv)                         # Newton step -> f32 accurate
    p = em * inv                                            # (BB, 1, S)

    # Weighted sum over S: second batched MXU matmul, f32 accumulation.
    out = jnp.einsum("bqk,bkd->bqd", p.astype(hyp.dtype), hyp,
                     preferred_element_type=jnp.float32)    # (BB, 1, D)

    # premise_mask = ones_like(hyp_mask[:, 0:1]) -> identity multiply, omitted.
    out_ref[...] = out[:, 0, :].astype(out_ref.dtype)


def _round_up(x, m):
    return -(-x // m) * m


def _vmem_capacity_bytes():
    try:
        return int(pltpu.get_tpu_info().vmem_capacity_bytes)
    except Exception:
        return 64 * 1024 * 1024          # conservative (v7x-sized) fallback


def _per_row_vmem_bytes(S, D, in_itemsize, out_itemsize):
    """VMEM bytes per batch row, including in-kernel intermediates."""
    s_pad = _round_up(S, 128)            # S sits on lanes for mask / softmax
    d_pad = _round_up(D, 128)
    return (2 * S * D * in_itemsize      # hyp block (BlockSpec double buffer)
            + 2 * 8 * s_pad * 4          # (1,S) f32 mask block, double-buffered
            + 2 * d_pad * out_itemsize   # output row, double-buffered
            + 6 * 8 * s_pad * 4          # scores/ms/e/em/p f32 intermediates + slack
            + 2 * 8 * d_pad * 4)         # broadcast weight + f32 output accumulator


_MIN_GRID_STEPS = 4      # keep both v7x TCs fed and the pipeline overlapped


def _choose_block_batch(B, S, D, in_itemsize, out_itemsize, budget_bytes):
    per_row = _per_row_vmem_bytes(S, D, in_itemsize, out_itemsize)
    cap = max(1, budget_bytes // per_row)
    bb = min(B, cap)
    if bb == B and B >= 8 * _MIN_GRID_STEPS:
        # Whole batch fits in one block; still split into >= 4 blocks so both
        # v7x TensorCores get grid steps and DMA/compute/writeback overlap on
        # single-TC chips (per-step overhead is only ~0.35 us).
        bb = min(B, _round_up(-(-B // _MIN_GRID_STEPS), 8))
    elif 8 <= bb < B:
        bb -= bb % 8                     # dense (8,128) output tiles, unmasked stores
    # TODO(synk): add an S-tiled (online-softmax) fallback for rows so long
    # that even bb == 1 exceeds the per-core VMEM budget (v7x, 64 MiB/TC).
    return max(1, min(bb, B))


def param_uni_attention(weight, hypothesis_batch, hypothesis_mask, *, block_batch=None):
    """weight: (1,1,D) | hypothesis_batch: (B,S,D) | hypothesis_mask: (B,S)."""
    B, S, D = hypothesis_batch.shape
    out_dtype = hypothesis_batch.dtype
    in_isz = jnp.dtype(hypothesis_batch.dtype).itemsize
    out_isz = jnp.dtype(out_dtype).itemsize

    phys_vmem = _vmem_capacity_bytes()
    budget = phys_vmem // 2              # headroom for compiler scratch etc.
    if block_batch is None:
        BB = _choose_block_batch(B, S, D, in_isz, out_isz, budget)
    else:
        BB = max(1, min(int(block_batch), B))

    w2d = jnp.reshape(weight, (1, D))
    mask3 = jnp.reshape(hypothesis_mask, (B, 1, S)).astype(jnp.float32)

    # vmem limit derived from the actual tile bytes (with headroom), clamped
    # to the physical per-core capacity.
    per_row = _per_row_vmem_bytes(S, D, in_isz, out_isz)
    vmem_limit = int(min(phys_vmem,
                         max(BB * per_row * 5 // 4, 32 * 1024 * 1024)))

    cost = pl.CostEstimate(
        flops=int(4 * B * S * D + 6 * B * S),
        transcendentals=int(B * S),
        bytes_accessed=int(B * S * D * in_isz + B * S * 4 + B * D * out_isz + D * 4),
    )

    out2d = pl.pallas_call(
        _param_uni_attn_kernel,
        out_shape=jax.ShapeDtypeStruct((B, D), out_dtype),
        grid=(pl.cdiv(B, BB),),          # ragged last block handled by Pallas
        in_specs=[
            pl.BlockSpec((1, D), lambda i: (0, 0)),           # weight (shared)
            pl.BlockSpec((BB, S, D), lambda i: (i, 0, 0)),    # hypotheses (streamed)
            pl.BlockSpec((BB, 1, S), lambda i: (i, 0, 0)),    # lane-dense mask
        ],
        out_specs=pl.BlockSpec((BB, D), lambda i: (i, 0)),
        compiler_params=pltpu.CompilerParams(
            dimension_semantics=("parallel",),
            vmem_limit_bytes=vmem_limit,
        ),
        cost_estimate=cost,
    )(w2d, hypothesis_batch, mask3)

    return out2d.reshape(B, 1, D)        # restore the module's (B, 1, D) shape


def _reference_forward(weight, hypothesis_batch, hypothesis_mask):
    """Pure-JAX reproduction of the PyTorch forward, for verification."""
    B, S, D = hypothesis_batch.shape
    premise = jnp.broadcast_to(jnp.reshape(weight, (1, 1, D)), (B, 1, D))
    sim = jnp.einsum("bpd,bsd->bps", premise,
                     hypothesis_batch.astype(jnp.float32)) / math.sqrt(D)
    m = hypothesis_mask[:, None, :].astype(jnp.float32)       # (B,1,S)
    attn = jax.nn.softmax(sim * m, axis=-1)
    attn = attn * m
    attn = attn / (jnp.sum(attn, axis=-1, keepdims=True) + 1e-13)
    out = jnp.einsum("bps,bsd->bpd", attn,
                     hypothesis_batch.astype(jnp.float32))
    premise_mask = jnp.ones((B, 1, 1), jnp.float32)            # all ones
    return out * premise_mask


if __name__ == "__main__":
    B, S, D = 8, 16, 128
    key = jax.random.PRNGKey(0)
    k_w, k_h = jax.random.split(key)

    # Module __init__ uses torch.zeros(1, 1, hidden_size); a zero weight gives
    # a degenerate (uniform-attention) test, so a deterministic random init of
    # the same shape is used.  Inputs are rounded to bf16-representable values
    # so the MXU contractions (bf16 passes at default TPU matmul precision)
    # stay effectively exact; the comparison tolerance below covers the
    # remaining default-precision rounding of the attention weights.
    weight = (0.1 * jax.random.normal(k_w, (1, 1, D), jnp.float32)
              ).astype(jnp.bfloat16).astype(jnp.float32)
    hypothesis_batch = jax.random.normal(
        k_h, (B, S, D), jnp.float32).astype(jnp.bfloat16).astype(jnp.float32)
    lengths = jnp.array([S, S - 3, S // 2, 1, S, 5, S - 1, 2])
    hypothesis_mask = (jnp.arange(S)[None, :] < lengths[:, None]).astype(jnp.float32)

    out = jax.block_until_ready(
        param_uni_attention(weight, hypothesis_batch, hypothesis_mask))
    ref = _reference_forward(weight, hypothesis_batch, hypothesis_mask)
    assert out.shape == (B, 1, D), out.shape
    assert jnp.allclose(out, ref, atol=2e-2, rtol=2e-2), (
        f"max abs err {jnp.max(jnp.abs(out - ref))}")

    # Ragged last block: the batch block does not divide B (grid = cdiv(B,BB)).
    # Junk reads in the tail rows stay row-isolated and the out-of-range writes
    # are dropped; row 0 is fully masked to exercise the +1e-13 path.
    B2 = 12
    hyp2 = jax.random.normal(
        jax.random.PRNGKey(1), (B2, S, D), jnp.float32
    ).astype(jnp.bfloat16).astype(jnp.float32)
    lengths2 = jnp.arange(B2) % (S + 1)
    mask2 = (jnp.arange(S)[None, :] < lengths2[:, None]).astype(jnp.float32)

    out2 = jax.block_until_ready(
        param_uni_attention(weight, hyp2, mask2, block_batch=8))
    ref2 = _reference_forward(weight, hyp2, mask2)
    assert out2.shape == (B2, 1, D), out2.shape
    assert jnp.allclose(out2, ref2, atol=2e-2, rtol=2e-2), (
        f"max abs err {jnp.max(jnp.abs(out2 - ref2))}")

    print("KERNEL_OK")
</pallas_src>

<mosaic_0001>
module attributes {stable_mosaic.version = 11 : i64} {
  func.func @_param_uni_attn_kernel(%arg0: i32, %arg1: memref<1x128xf32, #tpu.memory_space<vmem>>, %arg2: memref<8x16x128xf32, #tpu.memory_space<vmem>>, %arg3: memref<8x1x16xf32, #tpu.memory_space<vmem>>, %arg4: memref<8x128xf32, #tpu.memory_space<vmem>>) attributes {dimension_semantics = [#tpu.dimension_semantics<parallel>], iteration_bounds = array<i64: 1>, scalar_prefetch = 0 : i64, scratch_operands = 0 : i64, tpu.core_type = #tpu.core_type<tc>, window_params = [{pipeline_mode = #tpu.pipeline_mode<synchronous>, transform_indices = @transform_0, window_bounds = array<i64: 1, 128>}, {transform_indices = @transform_1, window_bounds = array<i64: 8, 16, 128>}, {transform_indices = @transform_2, window_bounds = array<i64: 8, 1, 16>}, {transform_indices = @transform_3, window_bounds = array<i64: 8, 128>}]} {
    %c0 = arith.constant 0 : index
    %c0_0 = arith.constant 0 : index
    %c0_1 = arith.constant 0 : index
    %0 = vector.load %arg2[%c0, %c0_0, %c0_1] : memref<8x16x128xf32, #tpu.memory_space<vmem>>, vector<8x16x128xf32>
    %c0_2 = arith.constant 0 : index
    %c0_3 = arith.constant 0 : index
    %1 = vector.load %arg1[%c0_2, %c0_3] : memref<1x128xf32, #tpu.memory_space<vmem>>, vector<1x128xf32>
    %2 = vector.shape_cast %1 : vector<1x128xf32> to vector<1x1x128xf32>
    %3 = vector.shape_cast %2 : vector<1x1x128xf32> to vector<1x1x128xf32>
    %4 = vector.broadcast %3 : vector<1x1x128xf32> to vector<8x1x128xf32>
    %c0_4 = arith.constant 0 : index
    %c0_5 = arith.constant 0 : index
    %c0_6 = arith.constant 0 : index
    %5 = vector.load %arg3[%c0_4, %c0_5, %c0_6] : memref<8x1x16xf32, #tpu.memory_space<vmem>>, vector<8x1x16xf32>
    "tpu.trace_start"() <{level = 10 : i32, message = "bqd,bkd->bqk"}> : () -> ()
    %cst = arith.constant dense<0.000000e+00> : vector<8x1x16xf32>
    %6 = tpu.matmul %4, %0, %cst {dimension_numbers = #tpu.dot_dimension_numbers<[2], [2], [1], [1], [0, 0, 0, 1, 1, 1], [0], [0]>} : vector<8x1x128xf32>, vector<8x16x128xf32>, vector<8x1x16xf32> -> vector<8x1x16xf32>
    "tpu.trace_stop"() : () -> ()
    %cst_7 = arith.constant 0.0883883461 : f32
    %7 = vector.broadcast %cst_7 : f32 to vector<8x1x16xf32>
    %8 = arith.mulf %6, %7 : vector<8x1x16xf32>
    %9 = arith.mulf %8, %5 : vector<8x1x16xf32>
    %cst_8 = arith.constant dense<0xFF800000> : vector<8x1xf32>
    %10 = vector.multi_reduction <maximumf>, %9, %cst_8 [2] : vector<8x1x16xf32> to vector<8x1xf32>
    %11 = vector.shape_cast %10 : vector<8x1xf32> to vector<8x1x1xf32>
    %12 = vector.broadcast %11 : vector<8x1x1xf32> to vector<8x1x16xf32>
    %13 = arith.subf %9, %12 : vector<8x1x16xf32>
    %14 = math.exp %13 : vector<8x1x16xf32>
    %15 = arith.mulf %14, %5 : vector<8x1x16xf32>
    %cst_9 = arith.constant dense<0.000000e+00> : vector<8x1xf32>
    %16 = vector.multi_reduction <add>, %15, %cst_9 [2] : vector<8x1x16xf32> to vector<8x1xf32>
    %17 = vector.shape_cast %16 : vector<8x1xf32> to vector<8x1x1xf32>
    %cst_10 = arith.constant dense<0.000000e+00> : vector<8x1xf32>
    %18 = vector.multi_reduction <add>, %14, %cst_10 [2] : vector<8x1x16xf32> to vector<8x1xf32>
    %19 = vector.shape_cast %18 : vector<8x1xf32> to vector<8x1x1xf32>
    %cst_11 = arith.constant 9.99999982E-14 : f32
    %20 = vector.broadcast %cst_11 : f32 to vector<8x1x1xf32>
    %21 = arith.mulf %20, %19 : vector<8x1x1xf32>
    %22 = arith.addf %17, %21 : vector<8x1x1xf32>
    %23 = tpu.reciprocal %22 {approx = true} : vector<8x1x1xf32> -> vector<8x1x1xf32>
    %24 = arith.mulf %22, %23 : vector<8x1x1xf32>
    %cst_12 = arith.constant 2.000000e+00 : f32
    %25 = vector.broadcast %cst_12 : f32 to vector<8x1x1xf32>
    %26 = arith.subf %25, %24 : vector<8x1x1xf32>
    %27 = arith.mulf %23, %26 : vector<8x1x1xf32>
    %28 = vector.broadcast %27 : vector<8x1x1xf32> to vector<8x1x16xf32>
    %29 = arith.mulf %15, %28 : vector<8x1x16xf32>
    "tpu.trace_start"() <{level = 10 : i32, message = "bqk,bkd->bqd"}> : () -> ()
    %cst_13 = arith.constant dense<0.000000e+00> : vector<8x1x128xf32>
    %30 = tpu.matmul %29, %0, %cst_13 {dimension_numbers = #tpu.dot_dimension_numbers<[2], [1], [1], [2], [0, 0, 0, 1, 1, 2], [0], [0]>} : vector<8x1x16xf32>, vector<8x16x128xf32>, vector<8x1x128xf32> -> vector<8x1x128xf32>
    "tpu.trace_stop"() : () -> ()
    %31 = vector.shape_cast %30 : vector<8x1x128xf32> to vector<8x128xf32>
    %c0_14 = arith.constant 0 : index
    %c0_15 = arith.constant 0 : index
    %32 = vector.load %arg4[%c0_14, %c0_15] : memref<8x128xf32, #tpu.memory_space<vmem>>, vector<8x128xf32>
    tpu.vector_store %arg4[%c0_14, %c0_15], %31 {strides = array<i32>} : memref<8x128xf32, #tpu.memory_space<vmem>>, vector<8x128xf32>,
    return
  }
  func.func @transform_0(%arg0: i32) -> (i32, i32) {
    %c0_i32 = arith.constant 0 : i32
    %c0_i32_0 = arith.constant 0 : i32
    %c0_i32_1 = arith.constant 0 : i32
    return %c0_i32, %c0_i32_0 : i32, i32
  }
  func.func @transform_1(%arg0: i32) -> (i32, i32, i32) {
    %c0_i32 = arith.constant 0 : i32
    %c0_i32_0 = arith.constant 0 : i32
    %c0_i32_1 = arith.constant 0 : i32
    return %arg0, %c0_i32, %c0_i32_0 : i32, i32, i32
  }
  func.func @transform_2(%arg0: i32) -> (i32, i32, i32) {
    %c0_i32 = arith.constant 0 : i32
    %c0_i32_0 = arith.constant 0 : i32
    %c0_i32_1 = arith.constant 0 : i32
    return %arg0, %c0_i32, %c0_i32_0 : i32, i32, i32
  }
  func.func @transform_3(%arg0: i32) -> (i32, i32) {
    %c0_i32 = arith.constant 0 : i32
    %c0_i32_0 = arith.constant 0 : i32
    return %arg0, %c0_i32 : i32, i32
  }
}

</mosaic_0001>

<llo_original>
// kernel: tpu_custom_call.1
$region0: #{tpu_custom_call.1}
  #allocation0 [shape = 'u32[]', space=smem, size = 0x4, offset = 0x4, fixed_abs, tag = 'smem constant byte address 0x4 - core index']
  #allocation1 [shape = 'u32[144,128]{1,0:T(1,128)}', space=vmem, size = 0x12000, scoped, tag = 'internal scratch']
  %s0 = inlined_call_operand.hbm [shape: f32[1,128], index: 0, kind: input, shape index: {}]
  %s1 = inlined_call_operand.hbm [shape: f32[8,16,128], index: 1, kind: input, shape index: {}]
  %s2 = inlined_call_operand.hbm [shape: f32[8,1,16], index: 2, kind: input, shape index: {}]
  %s3 = inlined_call_operand.hbm [shape: f32[8,128], index: 3, kind: output, shape index: {}]
  %s4 = sld [smem:[#allocation0]]
  $region34: #{tpu_custom_call.1} parent=0
    _
  %s6 = ssub.s32 1, %s4
  %s7 = scalar_select 0, %s6, %s4
  $region1: #{tpu_custom_call.1} parent=0
    #allocation2 [shape = 'u8[512]{0}', space=vmem, size = 0x400, scoped, tag = 'input window, operand 0, single buffered']
    #allocation3 [shape = 's32[1]{0}', space=sflag, size = 0x4, scoped, tag = 'scoped memory for tpu_custom_call.1']
    #allocation4 [shape = 's32[1]{0}', space=sflag, size = 0x4, scoped, tag = 'scoped memory for tpu_custom_call.1']
    #allocation5 [shape = 'u8[65536]{0}', space=vmem, size = 0x10000, scoped, tag = 'input window, operand 1, single buffered']
    #allocation6 [shape = 's32[1]{0}', space=sflag, size = 0x4, scoped, tag = 'scoped memory for tpu_custom_call.1']
    #allocation7 [shape = 'u8[4096]{0}', space=vmem, size = 0x1000, scoped, tag = 'input window, operand 2, single buffered']
    #allocation8 [shape = 'u8[4096]{0}', space=vmem, size = 0x1000, scoped, tag = 'output window, operand 0, single buffered']
    %8 = vsyncpa [#allocation3], 0
    %9 = vsyncpa [#allocation6], 0
    %10 = vsyncpa [#allocation4], 0
    // Predicated region
    $region2: #{tpu_custom_call.1} parent=1 // pred_check
      _
    $region3: #{tpu_custom_call.1} parent=1 // pred_check_branch
      %12 = sbr.rel (0) target = $region5
    $region4: #{tpu_custom_call.1} parent=1 // pred_region
      %s14 = ssub.s32 16, 16
      %15 = vsyncadd [#allocation3], %s14
      %s17 = sshll.u32 [#allocation2], 4
      %s18 = int_to_ptr.vmem [resolvable:$true] %s17
      %20 = dma.hbm_to_vmem [thread:$0]  %s0, 16, %s18, [#allocation3]
    $region5: #{tpu_custom_call.1} parent=1 // pred_fallthru
      _
    // Predicated region
    $region6: #{tpu_custom_call.1} parent=1 // pred_check
      _
    $region7: #{tpu_custom_call.1} parent=1 // pred_check_branch
      %22 = sbr.rel (0) target = $region9
    $region8: #{tpu_custom_call.1} parent=1 // pred_region
      %s24 = ssub.s32 2048, 2048
      %25 = vsyncadd [#allocation6], %s24
      %s26 = sshll.u32 [#allocation5], 4
      %s27 = int_to_ptr.vmem [resolvable:$true] %s26
      %32 = dma.hbm_to_vmem [thread:$0]  %s1, 2048, %s27, [#allocation6], 128, 128, 8
    $region9: #{tpu_custom_call.1} parent=1 // pred_fallthru
      _
    // Predicated region
    $region10: #{tpu_custom_call.1} parent=1 // pred_check
      _
    $region11: #{tpu_custom_call.1} parent=1 // pred_check_branch
      %34 = sbr.rel (0) target = $region13
    $region12: #{tpu_custom_call.1} parent=1 // pred_region
      %s36 = ssub.s32 128, 128
      %37 = vsyncadd [#allocation6], %s36
      %s38 = sshll.u32 [#allocation7], 4
      %s39 = int_to_ptr.vmem [resolvable:$true] %s38
      %44 = dma.hbm_to_vmem [thread:$0]  %s2, 128, %s39, [#allocation6], 16, 16, 1
    $region13: #{tpu_custom_call.1} parent=1 // pred_fallthru
      _
    // Predicated region
    $region14: #{tpu_custom_call.1} parent=1 // pred_check
      _
    $region15: #{tpu_custom_call.1} parent=1 // pred_check_branch
      %46 = sbr.rel (0) target = $region17
    $region16: #{tpu_custom_call.1} parent=1 // pred_region
      %47 = dma.done [#allocation3], 16
    $region17: #{tpu_custom_call.1} parent=1 // pred_fallthru
      _
    // Predicated region
    $region18: #{tpu_custom_call.1} parent=1 // pred_check
      _
    $region19: #{tpu_custom_call.1} parent=1 // pred_check_branch
      %49 = sbr.rel (0) target = $region21
    $region20: #{tpu_custom_call.1} parent=1 // pred_region
      %50 = dma.done [#allocation6], 2048
    $region21: #{tpu_custom_call.1} parent=1 // pred_fallthru
      _
    // Predicated region
    $region22: #{tpu_custom_call.1} parent=1 // pred_check
      _
    $region23: #{tpu_custom_call.1} parent=1 // pred_check_branch
      %52 = sbr.rel (0) target = $region25
    $region24: #{tpu_custom_call.1} parent=1 // pred_region
      %53 = dma.done [#allocation6], 128
    $region25: #{tpu_custom_call.1} parent=1 // pred_fallthru
      _
    %v54 = vld [vmem:[#allocation5] sm:$0xff]
    %v55 = vld [vmem:[#allocation5 + $0x8] sm:$0xff]
    %v56 = vld [vmem:[#allocation5 + $0x10] sm:$0xff]
    %v57 = vld [vmem:[#allocation5 + $0x18] sm:$0xff]
    %v58 = vld [vmem:[#allocation5 + $0x20] sm:$0xff]
    %v59 = vld [vmem:[#allocation5 + $0x28] sm:$0xff]
    %v60 = vld [vmem:[#allocation5 + $0x30] sm:$0xff]
    %v61 = vld [vmem:[#allocation5 + $0x38] sm:$0xff]
    %v62 = vld [vmem:[#allocation5 + $0x40] sm:$0xff]
    %v63 = vld [vmem:[#allocation5 + $0x48] sm:$0xff]
    %v64 = vld [vmem:[#allocation5 + $0x50] sm:$0xff]
    %v65 = vld [vmem:[#allocation5 + $0x58] sm:$0xff]
    %v66 = vld [vmem:[#allocation5 + $0x60] sm:$0xff]
    %v67 = vld [vmem:[#allocation5 + $0x68] sm:$0xff]
    %v68 = vld [vmem:[#allocation5 + $0x70] sm:$0xff]
    %v69 = vld [vmem:[#allocation5 + $0x78] sm:$0xff]
    %v70 = vld [vmem:[#allocation2] sm:$0x1]
    %v71 = vld [vmem:[#allocation7] sm:$0x1]
    %v72 = vld [vmem:[#allocation7 + $0x1] sm:$0x1]
    %v73 = vld [vmem:[#allocation7 + $0x2] sm:$0x1]
    %v74 = vld [vmem:[#allocation7 + $0x3] sm:$0x1]
    %v75 = vld [vmem:[#allocation7 + $0x4] sm:$0x1]
    %v76 = vld [vmem:[#allocation7 + $0x5] sm:$0x1]
    %v77 = vld [vmem:[#allocation7 + $0x6] sm:$0x1]
    %v78 = vld [vmem:[#allocation7 + $0x7] sm:$0x1]
    %79 = vmatprep.subr.mxu0 0.0
    %80 = vmatpush1.xpose.msra.mxu0 %v54
    %81 = vmatprep.subr.mxu0 0.0
    %82 = vmatpush1.xpose.msra.mxu0 %v55
    %83 = vmatprep.subr.mxu0 0.0
    %84 = vmatpush1.xpose.msra.mxu0 0.0
    %85 = vmatprep.subr.mxu0 0.0
    %86 = vmatpush1.xpose.msra.mxu0 0.0
    %87 = vmatprep.subr.mxu0 0.0
    %88 = vmatpush1.xpose.msra.mxu0 0.0
    %89 = vmatprep.subr.mxu0 0.0
    %90 = vmatpush1.xpose.msra.mxu0 0.0
    %91 = vmatprep.subr.mxu0 0.0
    %92 = vmatpush1.xpose.msra.mxu0 0.0
    %93 = vmatprep.subr.mxu0 0.0
    %94 = vmatpush1.xpose.msra.mxu0 0.0
    %95 = vmatprep.subr.mxu0 0.0
    %96 = vmatpush1.xpose.msra.mxu0 0.0
    %97 = vmatprep.subr.mxu0 0.0
    %98 = vmatpush1.xpose.msra.mxu0 0.0
    %99 = vmatprep.subr.mxu0 0.0
    %100 = vmatpush1.xpose.msra.mxu0 0.0
    %101 = vmatprep.subr.mxu0 0.0
    %102 = vmatpush1.xpose.msra.mxu0 0.0
    %103 = vmatprep.subr.mxu0 0.0
    %104 = vmatpush1.xpose.msra.mxu0 0.0
    %105 = vmatprep.subr.mxu0 0.0
    %106 = vmatpush1.xpose.msra.mxu0 0.0
    %107 = vmatprep.subr.mxu0 0.0
    %108 = vmatpush1.xpose.msra.mxu0 0.0
    %109 = vmatprep.subr.mxu0 0.0
    %110 = vmatpush1.xpose.msra.mxu0 0.0
    %111 = vmatprep.subr.mxu0 0.0
    %112 = vmatpush1.xpose.msra.mxu0 0.0
    %113 = vmatprep.subr.mxu0 0.0
    %114 = vmatpush1.xpose.msra.mxu0 0.0
    %115 = vmatprep.subr.mxu0 0.0
    %116 = vmatpush1.xpose.msra.mxu0 0.0
    %117 = vmatprep.subr.mxu0 0.0
    %118 = vmatpush1.xpose.msra.mxu0 0.0
    %119 = vmatprep.subr.mxu0 0.0
    %120 = vmatpush1.xpose.msra.mxu0 0.0
    %121 = vmatprep.subr.mxu0 0.0
    %122 = vmatpush1.xpose.msra.mxu0 0.0
    %123 = vmatprep.subr.mxu0 0.0
    %124 = vmatpush1.xpose.msra.mxu0 0.0
    %125 = vmatprep.subr.mxu0 0.0
    %126 = vmatpush1.xpose.msra.mxu0 0.0
    %127 = vmatprep.subr.mxu0 0.0
    %128 = vmatpush1.xpose.msra.mxu0 0.0
    %129 = vmatprep.subr.mxu0 0.0
    %130 = vmatpush1.xpose.msra.mxu0 0.0
    %131 = vmatprep.subr.mxu0 0.0
    %132 = vmatpush1.xpose.msra.mxu0 0.0
    %133 = vmatprep.subr.mxu0 0.0
    %134 = vmatpush1.xpose.msra.mxu0 0.0
    %135 = vmatprep.subr.mxu0 0.0
    %136 = vmatpush1.xpose.msra.mxu0 0.0
    %137 = vmatprep.subr.mxu0 0.0
    %138 = vmatpush1.xpose.msra.mxu0 0.0
    %139 = vmatprep.subr.mxu0 0.0
    %140 = vmatpush1.xpose.msra.mxu0 0.0
    %141 = vmatprep.subr.mxu0 0.0
    %142 = vmatpush1.xpose.msra.mxu0 0.0
    %143 = vmatprep.mubr.f32.mxu0 0.0
    %144 = vmatmul.mubr.f32.gmra.mrb[0].mxu0 %v70
    %v145 = vpop.f32.mrb[0].mxu0
    %v146 = vadd.f32 0.0, %v145
    %v147 = vpop.f32.mrb[0].mxu0
    %148 = vdwg.mxu0
    %149 = vmatprep.subr.mxu0 0.0
    %150 = vmatpush1.xpose.msra.mxu0 %v56
    %151 = vmatprep.subr.mxu0 0.0
    %152 = vmatpush1.xpose.msra.mxu0 %v57
    %153 = vmatprep.subr.mxu0 0.0
    %154 = vmatpush1.xpose.msra.mxu0 0.0
    %155 = vmatprep.subr.mxu0 0.0
    %156 = vmatpush1.xpose.msra.mxu0 0.0
    %157 = vmatprep.subr.mxu0 0.0
    %158 = vmatpush1.xpose.msra.mxu0 0.0
    %159 = vmatprep.subr.mxu0 0.0
    %160 = vmatpush1.xpose.msra.mxu0 0.0
    %161 = vmatprep.subr.mxu0 0.0
    %162 = vmatpush1.xpose.msra.mxu0 0.0
    %163 = vmatprep.subr.mxu0 0.0
    %164 = vmatpush1.xpose.msra.mxu0 0.0
    %165 = vmatprep.subr.mxu0 0.0
    %166 = vmatpush1.xpose.msra.mxu0 0.0
    %167 = vmatprep.subr.mxu0 0.0
    %168 = vmatpush1.xpose.msra.mxu0 0.0
    %169 = vmatprep.subr.mxu0 0.0
    %170 = vmatpush1.xpose.msra.mxu0 0.0
    %171 = vmatprep.subr.mxu0 0.0
    %172 = vmatpush1.xpose.msra.mxu0 0.0
    %173 = vmatprep.subr.mxu0 0.0
    %174 = vmatpush1.xpose.msra.mxu0 0.0
    %175 = vmatprep.subr.mxu0 0.0
    %176 = vmatpush1.xpose.msra.mxu0 0.0
    %177 = vmatprep.subr.mxu0 0.0
    %178 = vmatpush1.xpose.msra.mxu0 0.0
    %179 = vmatprep.subr.mxu0 0.0
    %180 = vmatpush1.xpose.msra.mxu0 0.0
    %181 = vmatprep.subr.mxu0 0.0
    %182 = vmatpush1.xpose.msra.mxu0 0.0
    %183 = vmatprep.subr.mxu0 0.0
    %184 = vmatpush1.xpose.msra.mxu0 0.0
    %185 = vmatprep.subr.mxu0 0.0
    %186 = vmatpush1.xpose.msra.mxu0 0.0
    %187 = vmatprep.subr.mxu0 0.0
    %188 = vmatpush1.xpose.msra.mxu0 0.0
    %189 = vmatprep.subr.mxu0 0.0
    %190 = vmatpush1.xpose.msra.mxu0 0.0
    %191 = vmatprep.subr.mxu0 0.0
    %192 = vmatpush1.xpose.msra.mxu0 0.0
    %193 = vmatprep.subr.mxu0 0.0
    %194 = vmatpush1.xpose.msra.mxu0 0.0
    %195 = vmatprep.subr.mxu0 0.0
    %196 = vmatpush1.xpose.msra.mxu0 0.0
    %197 = vmatprep.subr.mxu0 0.0
    %198 = vmatpush1.xpose.msra.mxu0 0.0
    %199 = vmatprep.subr.mxu0 0.0
    %200 = vmatpush1.xpose.msra.mxu0 0.0
    %201 = vmatprep.subr.mxu0 0.0
    %202 = vmatpush1.xpose.msra.mxu0 0.0
    %203 = vmatprep.subr.mxu0 0.0
    %204 = vmatpush1.xpose.msra.mxu0 0.0
    %205 = vmatprep.subr.mxu0 0.0
    %206 = vmatpush1.xpose.msra.mxu0 0.0
    %207 = vmatprep.subr.mxu0 0.0
    %208 = vmatpush1.xpose.msra.mxu0 0.0
    %209 = vmatprep.subr.mxu0 0.0
    %210 = vmatpush1.xpose.msra.mxu0 0.0
    %211 = vmatprep.subr.mxu0 0.0
    %212 = vmatpush1.xpose.msra.mxu0 0.0
    %213 = vmatprep.mubr.f32.mxu0 0.0
    %214 = vmatmul.mubr.f32.gmra.mrb[0].mxu0 %v70
    %v215 = vpop.f32.mrb[0].mxu0
    %v216 = vadd.f32 0.0, %v215
    %v217 = vpop.f32.mrb[0].mxu0
    %218 = vdwg.mxu0
    %219 = vmatprep.subr.mxu0 0.0
    %220 = vmatpush1.xpose.msra.mxu0 %v58
    %221 = vmatprep.subr.mxu0 0.0
    %222 = vmatpush1.xpose.msra.mxu0 %v59
    %223 = vmatprep.subr.mxu0 0.0
    %224 = vmatpush1.xpose.msra.mxu0 0.0
    %225 = vmatprep.subr.mxu0 0.0
    %226 = vmatpush1.xpose.msra.mxu0 0.0
    %227 = vmatprep.subr.mxu0 0.0
    %228 = vmatpush1.xpose.msra.mxu0 0.0
    %229 = vmatprep.subr.mxu0 0.0
    %230 = vmatpush1.xpose.msra.mxu0 0.0
    %231 = vmatprep.subr.mxu0 0.0
    %232 = vmatpush1.xpose.msra.mxu0 0.0
    %233 = vmatprep.subr.mxu0 0.0
    %234 = vmatpush1.xpose.msra.mxu0 0.0
    %235 = vmatprep.subr.mxu0 0.0
    %236 = vmatpush1.xpose.msra.mxu0 0.0
    %237 = vmatprep.subr.mxu0 0.0
    %238 = vmatpush1.xpose.msra.mxu0 0.0
    %239 = vmatprep.subr.mxu0 0.0
    %240 = vmatpush1.xpose.msra.mxu0 0.0
    %241 = vmatprep.subr.mxu0 0.0
    %242 = vmatpush1.xpose.msra.mxu0 0.0
    %243 = vmatprep.subr.mxu0 0.0
    %244 = vmatpush1.xpose.msra.mxu0 0.0
    %245 = vmatprep.subr.mxu0 0.0
    %246 = vmatpush1.xpose.msra.mxu0 0.0
    %247 = vmatprep.subr.mxu0 0.0
    %248 = vmatpush1.xpose.msra.mxu0 0.0
    %249 = vmatprep.subr.mxu0 0.0
    %250 = vmatpush1.xpose.msra.mxu0 0.0
    %251 = vmatprep.subr.mxu0 0.0
    %252 = vmatpush1.xpose.msra.mxu0 0.0
    %253 = vmatprep.subr.mxu0 0.0
    %254 = vmatpush1.xpose.msra.mxu0 0.0
    %255 = vmatprep.subr.mxu0 0.0
    %256 = vmatpush1.xpose.msra.mxu0 0.0
    %257 = vmatprep.subr.mxu0 0.0
    %258 = vmatpush1.xpose.msra.mxu0 0.0
    %259 = vmatprep.subr.mxu0 0.0
    %260 = vmatpush1.xpose.msra.mxu0 0.0
    %261 = vmatprep.subr.mxu0 0.0
    %262 = vmatpush1.xpose.msra.mxu0 0.0
    %263 = vmatprep.subr.mxu0 0.0
    %264 = vmatpush1.xpose.msra.mxu0 0.0
    %265 = vmatprep.subr.mxu0 0.0
    %266 = vmatpush1.xpose.msra.mxu0 0.0
    %267 = vmatprep.subr.mxu0 0.0
    %268 = vmatpush1.xpose.msra.mxu0 0.0
    %269 = vmatprep.subr.mxu0 0.0
    %270 = vmatpush1.xpose.msra.mxu0 0.0
    %271 = vmatprep.subr.mxu0 0.0
    %272 = vmatpush1.xpose.msra.mxu0 0.0
    %273 = vmatprep.subr.mxu0 0.0
    %274 = vmatpush1.xpose.msra.mxu0 0.0
    %275 = vmatprep.subr.mxu0 0.0
    %276 = vmatpush1.xpose.msra.mxu0 0.0
    %277 = vmatprep.subr.mxu0 0.0
    %278 = vmatpush1.xpose.msra.mxu0 0.0
    %279 = vmatprep.subr.mxu0 0.0
    %280 = vmatpush1.xpose.msra.mxu0 0.0
    %281 = vmatprep.subr.mxu0 0.0
    %282 = vmatpush1.xpose.msra.mxu0 0.0
    %283 = vmatprep.mubr.f32.mxu0 0.0
    %284 = vmatmul.mubr.f32.gmra.mrb[0].mxu0 %v70
    %v285 = vpop.f32.mrb[0].mxu0
    %v286 = vadd.f32 0.0, %v285
    %v287 = vpop.f32.mrb[0].mxu0
    %288 = vdwg.mxu0
    %289 = vmatprep.subr.mxu0 0.0
    %290 = vmatpush1.xpose.msra.mxu0 %v60
    %291 = vmatprep.subr.mxu0 0.0
    %292 = vmatpush1.xpose.msra.mxu0 %v61
    %293 = vmatprep.subr.mxu0 0.0
    %294 = vmatpush1.xpose.msra.mxu0 0.0
    %295 = vmatprep.subr.mxu0 0.0
    %296 = vmatpush1.xpose.msra.mxu0 0.0
    %297 = vmatprep.subr.mxu0 0.0
    %298 = vmatpush1.xpose.msra.mxu0 0.0
    %299 = vmatprep.subr.mxu0 0.0
    %300 = vmatpush1.xpose.msra.mxu0 0.0
    %301 = vmatprep.subr.mxu0 0.0
    %302 = vmatpush1.xpose.msra.mxu0 0.0
    %303 = vmatprep.subr.mxu0 0.0
    %304 = vmatpush1.xpose.msra.mxu0 0.0
    %305 = vmatprep.subr.mxu0 0.0
    %306 = vmatpush1.xpose.msra.mxu0 0.0
    %307 = vmatprep.subr.mxu0 0.0
    %308 = vmatpush1.xpose.msra.mxu0 0.0
    %309 = vmatprep.subr.mxu0 0.0
    %310 = vmatpush1.xpose.msra.mxu0 0.0
    %311 = vmatprep.subr.mxu0 0.0
    %312 = vmatpush1.xpose.msra.mxu0 0.0
    %313 = vmatprep.subr.mxu0 0.0
    %314 = vmatpush1.xpose.msra.mxu0 0.0
    %315 = vmatprep.subr.mxu0 0.0
    %316 = vmatpush1.xpose.msra.mxu0 0.0
    %317 = vmatprep.subr.mxu0 0.0
    %318 = vmatpush1.xpose.msra.mxu0 0.0
    %319 = vmatprep.subr.mxu0 0.0
    %320 = vmatpush1.xpose.msra.mxu0 0.0
    %321 = vmatprep.subr.mxu0 0.0
    %322 = vmatpush1.xpose.msra.mxu0 0.0
    %323 = vmatprep.subr.mxu0 0.0
    %324 = vmatpush1.xpose.msra.mxu0 0.0
    %325 = vmatprep.subr.mxu0 0.0
    %326 = vmatpush1.xpose.msra.mxu0 0.0
    %327 = vmatprep.subr.mxu0 0.0
    %328 = vmatpush1.xpose.msra.mxu0 0.0
    %329 = vmatprep.subr.mxu0 0.0
    %330 = vmatpush1.xpose.msra.mxu0 0.0
    %331 = vmatprep.subr.mxu0 0.0
    %332 = vmatpush1.xpose.msra.mxu0 0.0
    %333 = vmatprep.subr.mxu0 0.0
    %334 = vmatpush1.xpose.msra.mxu0 0.0
    %335 = vmatprep.subr.mxu0 0.0
    %336 = vmatpush1.xpose.msra.mxu0 0.0
    %337 = vmatprep.subr.mxu0 0.0
    %338 = vmatpush1.xpose.msra.mxu0 0.0
    %339 = vmatprep.subr.mxu0 0.0
    %340 = vmatpush1.xpose.msra.mxu0 0.0
    %341 = vmatprep.subr.mxu0 0.0
    %342 = vmatpush1.xpose.msra.mxu0 0.0
    %343 = vmatprep.subr.mxu0 0.0
    %344 = vmatpush1.xpose.msra.mxu0 0.0
    %345 = vmatprep.subr.mxu0 0.0
    %346 = vmatpush1.xpose.msra.mxu0 0.0
    %347 = vmatprep.subr.mxu0 0.0
    %348 = vmatpush1.xpose.msra.mxu0 0.0
    %349 = vmatprep.subr.mxu0 0.0
    %350 = vmatpush1.xpose.msra.mxu0 0.0
    %351 = vmatprep.subr.mxu0 0.0
    %352 = vmatpush1.xpose.msra.mxu0 0.0
    %353 = vmatprep.mubr.f32.mxu0 0.0
    %354 = vmatmul.mubr.f32.gmra.mrb[0].mxu0 %v70
    %v355 = vpop.f32.mrb[0].mxu0
    %v356 = vadd.f32 0.0, %v355
    %v357 = vpop.f32.mrb[0].mxu0
    %358 = vdwg.mxu0
    %359 = vmatprep.subr.mxu0 0.0
    %360 = vmatpush1.xpose.msra.mxu0 %v62
    %361 = vmatprep.subr.mxu0 0.0
    %362 = vmatpush1.xpose.msra.mxu0 %v63
    %363 = vmatprep.subr.mxu0 0.0
    %364 = vmatpush1.xpose.msra.mxu0 0.0
    %365 = vmatprep.subr.mxu0 0.0
    %366 = vmatpush1.xpose.msra.mxu0 0.0
    %367 = vmatprep.subr.mxu0 0.0
    %368 = vmatpush1.xpose.msra.mxu0 0.0
    %369 = vmatprep.subr.mxu0 0.0
    %370 = vmatpush1.xpose.msra.mxu0 0.0
    %371 = vmatprep.subr.mxu0 0.0
    %372 = vmatpush1.xpose.msra.mxu0 0.0
    %373 = vmatprep.subr.mxu0 0.0
    %374 = vmatpush1.xpose.msra.mxu0 0.0
    %375 = vmatprep.subr.mxu0 0.0
    %376 = vmatpush1.xpose.msra.mxu0 0.0
    %377 = vmatprep.subr.mxu0 0.0
    %378 = vmatpush1.xpose.msra.mxu0 0.0
    %379 = vmatprep.subr.mxu0 0.0
    %380 = vmatpush1.xpose.msra.mxu0 0.0
    %381 = vmatprep.subr.mxu0 0.0
    %382 = vmatpush1.xpose.msra.mxu0 0.0
    %383 = vmatprep.subr.mxu0 0.0
    %384 = vmatpush1.xpose.msra.mxu0 0.0
    %385 = vmatprep.subr.mxu0 0.0
    %386 = vmatpush1.xpose.msra.mxu0 0.0
    %387 = vmatprep.subr.mxu0 0.0
    %388 = vmatpush1.xpose.msra.mxu0 0.0
    %389 = vmatprep.subr.mxu0 0.0
    %390 = vmatpush1.xpose.msra.mxu0 0.0
    %391 = vmatprep.subr.mxu0 0.0
    %392 = vmatpush1.xpose.msra.mxu0 0.0
    %393 = vmatprep.subr.mxu0 0.0
    %394 = vmatpush1.xpose.msra.mxu0 0.0
    %395 = vmatprep.subr.mxu0 0.0
    %396 = vmatpush1.xpose.msra.mxu0 0.0
    %397 = vmatprep.subr.mxu0 0.0
    %398 = vmatpush1.xpose.msra.mxu0 0.0
    %399 = vmatprep.subr.mxu0 0.0
    %400 = vmatpush1.xpose.msra.mxu0 0.0
    %401 = vmatprep.subr.mxu0 0.0
    %402 = vmatpush1.xpose.msra.mxu0 0.0
    %403 = vmatprep.subr.mxu0 0.0
    %404 = vmatpush1.xpose.msra.mxu0 0.0
    %405 = vmatprep.subr.mxu0 0.0
    %406 = vmatpush1.xpose.msra.mxu0 0.0
    %407 = vmatprep.subr.mxu0 0.0
    %408 = vmatpush1.xpose.msra.mxu0 0.0
    %409 = vmatprep.subr.mxu0 0.0
    %410 = vmatpush1.xpose.msra.mxu0 0.0
    %411 = vmatprep.subr.mxu0 0.0
    %412 = vmatpush1.xpose.msra.mxu0 0.0
    %413 = vmatprep.subr.mxu0 0.0
    %414 = vmatpush1.xpose.msra.mxu0 0.0
    %415 = vmatprep.subr.mxu0 0.0
    %416 = vmatpush1.xpose.msra.mxu0 0.0
    %417 = vmatprep.subr.mxu0 0.0
    %418 = vmatpush1.xpose.msra.mxu0 0.0
    %419 = vmatprep.subr.mxu0 0.0
    %420 = vmatpush1.xpose.msra.mxu0 0.0
    %421 = vmatprep.subr.mxu0 0.0
    %422 = vmatpush1.xpose.msra.mxu0 0.0
    %423 = vmatprep.mubr.f32.mxu0 0.0
    %424 = vmatmul.mubr.f32.gmra.mrb[0].mxu0 %v70
    %v425 = vpop.f32.mrb[0].mxu0
    %v426 = vadd.f32 0.0, %v425
    %v427 = vpop.f32.mrb[0].mxu0
    %428 = vdwg.mxu0
    %429 = vmatprep.subr.mxu0 0.0
    %430 = vmatpush1.xpose.msra.mxu0 %v64
    %431 = vmatprep.subr.mxu0 0.0
    %432 = vmatpush1.xpose.msra.mxu0 %v65
    %433 = vmatprep.subr.mxu0 0.0
    %434 = vmatpush1.xpose.msra.mxu0 0.0
    %435 = vmatprep.subr.mxu0 0.0
    %436 = vmatpush1.xpose.msra.mxu0 0.0
    %437 = vmatprep.subr.mxu0 0.0
    %438 = vmatpush1.xpose.msra.mxu0 0.0
    %439 = vmatprep.subr.mxu0 0.0
    %440 = vmatpush1.xpose.msra.mxu0 0.0
    %441 = vmatprep.subr.mxu0 0.0
    %442 = vmatpush1.xpose.msra.mxu0 0.0
    %443 = vmatprep.subr.mxu0 0.0
    %444 = vmatpush1.xpose.msra.mxu0 0.0
    %445 = vmatprep.subr.mxu0 0.0
    %446 = vmatpush1.xpose.msra.mxu0 0.0
    %447 = vmatprep.subr.mxu0 0.0
    %448 = vmatpush1.xpose.msra.mxu0 0.0
    %449 = vmatprep.subr.mxu0 0.0
    %450 = vmatpush1.xpose.msra.mxu0 0.0
    %451 = vmatprep.subr.mxu0 0.0
    %452 = vmatpush1.xpose.msra.mxu0 0.0
    %453 = vmatprep.subr.mxu0 0.0
    %454 = vmatpush1.xpose.msra.mxu0 0.0
    %455 = vmatprep.subr.mxu0 0.0
    %456 = vmatpush1.xpose.msra.mxu0 0.0
    %457 = vmatprep.subr.mxu0 0.0
    %458 = vmatpush1.xpose.msra.mxu0 0.0
    %459 = vmatprep.subr.mxu0 0.0
    %460 = vmatpush1.xpose.msra.mxu0 0.0
    %461 = vmatprep.subr.mxu0 0.0
    %462 = vmatpush1.xpose.msra.mxu0 0.0
    %463 = vmatprep.subr.mxu0 0.0
    %464 = vmatpush1.xpose.msra.mxu0 0.0
    %465 = vmatprep.subr.mxu0 0.0
    %466 = vmatpush1.xpose.msra.mxu0 0.0
    %467 = vmatprep.subr.mxu0 0.0
    %468 = vmatpush1.xpose.msra.mxu0 0.0
    %469 = vmatprep.subr.mxu0 0.0
    %470 = vmatpush1.xpose.msra.mxu0 0.0
    %471 = vmatprep.subr.mxu0 0.0
    %472 = vmatpush1.xpose.msra.mxu0 0.0
    %473 = vmatprep.subr.mxu0 0.0
    %474 = vmatpush1.xpose.msra.mxu0 0.0
    %475 = vmatprep.subr.mxu0 0.0
    %476 = vmatpush1.xpose.msra.mxu0 0.0
    %477 = vmatprep.subr.mxu0 0.0
    %478 = vmatpush1.xpose.msra.mxu0 0.0
    %479 = vmatprep.subr.mxu0 0.0
    %480 = vmatpush1.xpose.msra.mxu0 0.0
    %481 = vmatprep.subr.mxu0 0.0
    %482 = vmatpush1.xpose.msra.mxu0 0.0
    %483 = vmatprep.subr.mxu0 0.0
    %484 = vmatpush1.xpose.msra.mxu0 0.0
    %485 = vmatprep.subr.mxu0 0.0
    %486 = vmatpush1.xpose.msra.mxu0 0.0
    %487 = vmatprep.subr.mxu0 0.0
    %488 = vmatpush1.xpose.msra.mxu0 0.0
    %489 = vmatprep.subr.mxu0 0.0
    %490 = vmatpush1.xpose.msra.mxu0 0.0
    %491 = vmatprep.subr.mxu0 0.0
    %492 = vmatpush1.xpose.msra.mxu0 0.0
    %493 = vmatprep.mubr.f32.mxu0 0.0
    %494 = vmatmul.mubr.f32.gmra.mrb[0].mxu0 %v70
    %v495 = vpop.f32.mrb[0].mxu0
    %v496 = vadd.f32 0.0, %v495
    %v497 = vpop.f32.mrb[0].mxu0
    %498 = vdwg.mxu0
    %499 = vmatprep.subr.mxu0 0.0
    %500 = vmatpush1.xpose.msra.mxu0 %v66
    %501 = vmatprep.subr.mxu0 0.0
    %502 = vmatpush1.xpose.msra.mxu0 %v67
    %503 = vmatprep.subr.mxu0 0.0
    %504 = vmatpush1.xpose.msra.mxu0 0.0
    %505 = vmatprep.subr.mxu0 0.0
    %506 = vmatpush1.xpose.msra.mxu0 0.0
    %507 = vmatprep.subr.mxu0 0.0
    %508 = vmatpush1.xpose.msra.mxu0 0.0
    %509 = vmatprep.subr.mxu0 0.0
    %510 = vmatpush1.xpose.msra.mxu0 0.0
    %511 = vmatprep.subr.mxu0 0.0
    %512 = vmatpush1.xpose.msra.mxu0 0.0
    %513 = vmatprep.subr.mxu0 0.0
    %514 = vmatpush1.xpose.msra.mxu0 0.0
    %515 = vmatprep.subr.mxu0 0.0
    %516 = vmatpush1.xpose.msra.mxu0 0.0
    %517 = vmatprep.subr.mxu0 0.0
    %518 = vmatpush1.xpose.msra.mxu0 0.0
    %519 = vmatprep.subr.mxu0 0.0
    %520 = vmatpush1.xpose.msra.mxu0 0.0
    %521 = vmatprep.subr.mxu0 0.0
    %522 = vmatpush1.xpose.msra.mxu0 0.0
    %523 = vmatprep.subr.mxu0 0.0
    %524 = vmatpush1.xpose.msra.mxu0 0.0
    %525 = vmatprep.subr.mxu0 0.0
    %526 = vmatpush1.xpose.msra.mxu0 0.0
    %527 = vmatprep.subr.mxu0 0.0
    %528 = vmatpush1.xpose.msra.mxu0 0.0
    %529 = vmatprep.subr.mxu0 0.0
    %530 = vmatpush1.xpose.msra.mxu0 0.0
    %531 = vmatprep.subr.mxu0 0.0
    %532 = vmatpush1.xpose.msra.mxu0 0.0
    %533 = vmatprep.subr.mxu0 0.0
    %534 = vmatpush1.xpose.msra.mxu0 0.0
    %535 = vmatprep.subr.mxu0 0.0
    %536 = vmatpush1.xpose.msra.mxu0 0.0
    %537 = vmatprep.subr.mxu0 0.0
    %538 = vmatpush1.xpose.msra.mxu0 0.0
    %539 = vmatprep.subr.mxu0 0.0
    %540 = vmatpush1.xpose.msra.mxu0 0.0
    %541 = vmatprep.subr.mxu0 0.0
    %542 = vmatpush1.xpose.msra.mxu0 0.0
    %543 = vmatprep.subr.mxu0 0.0
    %544 = vmatpush1.xpose.msra.mxu0 0.0
    %545 = vmatprep.subr.mxu0 0.0
    %546 = vmatpush1.xpose.msra.mxu0 0.0
    %547 = vmatprep.subr.mxu0 0.0
    %548 = vmatpush1.xpose.msra.mxu0 0.0
    %549 = vmatprep.subr.mxu0 0.0
    %550 = vmatpush1.xpose.msra.mxu0 0.0
    %551 = vmatprep.subr.mxu0 0.0
    %552 = vmatpush1.xpose.msra.mxu0 0.0
    %553 = vmatprep.subr.mxu0 0.0
    %554 = vmatpush1.xpose.msra.mxu0 0.0
    %555 = vmatprep.subr.mxu0 0.0
    %556 = vmatpush1.xpose.msra.mxu0 0.0
    %557 = vmatprep.subr.mxu0 0.0
    %558 = vmatpush1.xpose.msra.mxu0 0.0
    %559 = vmatprep.subr.mxu0 0.0
    %560 = vmatpush1.xpose.msra.mxu0 0.0
    %561 = vmatprep.subr.mxu0 0.0
    %562 = vmatpush1.xpose.msra.mxu0 0.0
    %563 = vmatprep.mubr.f32.mxu0 0.0
    %564 = vmatmul.mubr.f32.gmra.mrb[0].mxu0 %v70
    %v565 = vpop.f32.mrb[0].mxu0
    %v566 = vadd.f32 0.0, %v565
    %v567 = vpop.f32.mrb[0].mxu0
    %568 = vdwg.mxu0
    %569 = vmatprep.subr.mxu0 0.0
    %570 = vmatpush1.xpose.msra.mxu0 %v68
    %571 = vmatprep.subr.mxu0 0.0
    %572 = vmatpush1.xpose.msra.mxu0 %v69
    %573 = vmatprep.subr.mxu0 0.0
    %574 = vmatpush1.xpose.msra.mxu0 0.0
    %575 = vmatprep.subr.mxu0 0.0
    %576 = vmatpush1.xpose.msra.mxu0 0.0
    %577 = vmatprep.subr.mxu0 0.0
    %578 = vmatpush1.xpose.msra.mxu0 0.0
    %579 = vmatprep.subr.mxu0 0.0
    %580 = vmatpush1.xpose.msra.mxu0 0.0
    %581 = vmatprep.subr.mxu0 0.0
    %582 = vmatpush1.xpose.msra.mxu0 0.0
    %583 = vmatprep.subr.mxu0 0.0
    %584 = vmatpush1.xpose.msra.mxu0 0.0
    %585 = vmatprep.subr.mxu0 0.0
    %586 = vmatpush1.xpose.msra.mxu0 0.0
    %587 = vmatprep.subr.mxu0 0.0
    %588 = vmatpush1.xpose.msra.mxu0 0.0
    %589 = vmatprep.subr.mxu0 0.0
    %590 = vmatpush1.xpose.msra.mxu0 0.0
    %591 = vmatprep.subr.mxu0 0.0
    %592 = vmatpush1.xpose.msra.mxu0 0.0
    %593 = vmatprep.subr.mxu0 0.0
    %594 = vmatpush1.xpose.msra.mxu0 0.0
    %595 = vmatprep.subr.mxu0 0.0
    %596 = vmatpush1.xpose.msra.mxu0 0.0
    %597 = vmatprep.subr.mxu0 0.0
    %598 = vmatpush1.xpose.msra.mxu0 0.0
    %599 = vmatprep.subr.mxu0 0.0
    %600 = vmatpush1.xpose.msra.mxu0 0.0
    %601 = vmatprep.subr.mxu0 0.0
    %602 = vmatpush1.xpose.msra.mxu0 0.0
    %603 = vmatprep.subr.mxu0 0.0
    %604 = vmatpush1.xpose.msra.mxu0 0.0
    %605 = vmatprep.subr.mxu0 0.0
    %606 = vmatpush1.xpose.msra.mxu0 0.0
    %607 = vmatprep.subr.mxu0 0.0
    %608 = vmatpush1.xpose.msra.mxu0 0.0
    %609 = vmatprep.subr.mxu0 0.0
    %610 = vmatpush1.xpose.msra.mxu0 0.0
    %611 = vmatprep.subr.mxu0 0.0
    %612 = vmatpush1.xpose.msra.mxu0 0.0
    %613 = vmatprep.subr.mxu0 0.0
    %614 = vmatpush1.xpose.msra.mxu0 0.0
    %615 = vmatprep.subr.mxu0 0.0
    %616 = vmatpush1.xpose.msra.mxu0 0.0
    %617 = vmatprep.subr.mxu0 0.0
    %618 = vmatpush1.xpose.msra.mxu0 0.0
    %619 = vmatprep.subr.mxu0 0.0
    %620 = vmatpush1.xpose.msra.mxu0 0.0
    %621 = vmatprep.subr.mxu0 0.0
    %622 = vmatpush1.xpose.msra.mxu0 0.0
    %623 = vmatprep.subr.mxu0 0.0
    %624 = vmatpush1.xpose.msra.mxu0 0.0
    %625 = vmatprep.subr.mxu0 0.0
    %626 = vmatpush1.xpose.msra.mxu0 0.0
    %627 = vmatprep.subr.mxu0 0.0
    %628 = vmatpush1.xpose.msra.mxu0 0.0
    %629 = vmatprep.subr.mxu0 0.0
    %630 = vmatpush1.xpose.msra.mxu0 0.0
    %631 = vmatprep.subr.mxu0 0.0
    %632 = vmatpush1.xpose.msra.mxu0 0.0
    %633 = vmatprep.mubr.f32.mxu0 0.0
    %634 = vmatmul.mubr.f32.gmra.mrb[0].mxu0 %v70
    %v635 = vpop.f32.mrb[0].mxu0
    %v636 = vadd.f32 0.0, %v635
    %v637 = vpop.f32.mrb[0].mxu0
    %638 = vdwg.mxu0
    %v639 = vmul.f32 %v146, 0.088388346
    %v640 = vmul.f32 %v216, 0.088388346
    %v641 = vmul.f32 %v286, 0.088388346
    %v642 = vmul.f32 %v356, 0.088388346
    %v643 = vmul.f32 %v426, 0.088388346
    %v644 = vmul.f32 %v496, 0.088388346
    %v645 = vmul.f32 %v566, 0.088388346
    %v646 = vmul.f32 %v636, 0.088388346
    %v647 = vmul.f32 %v639, %v71
    %v648 = vmul.f32 %v640, %v72
    %v649 = vmul.f32 %v641, %v73
    %v650 = vmul.f32 %v642, %v74
    %v651 = vmul.f32 %v643, %v75
    %v652 = vmul.f32 %v644, %v76
    %v653 = vmul.f32 %v645, %v77
    %v654 = vmul.f32 %v646, %v78
    %vm655 = vcmask 122880
    %v656 = vsel %vm655, %v647, -inf
    %657 = vmax.xlane.f32.xlu0 %v656
    %v658 = vpop.xlane.xlu0 %657
    %v659 = vsel %vm655, %v648, -inf
    %660 = vmax.xlane.f32.xlu0 %v659
    %v661 = vpop.xlane.xlu0 %660
    %v662 = vsel %vm655, %v649, -inf
    %663 = vmax.xlane.f32.xlu0 %v662
    %v664 = vpop.xlane.xlu0 %663
    %v665 = vsel %vm655, %v650, -inf
    %666 = vmax.xlane.f32.xlu0 %v665
    %v667 = vpop.xlane.xlu0 %666
    %v668 = vsel %vm655, %v651, -inf
    %669 = vmax.xlane.f32.xlu0 %v668
    %v670 = vpop.xlane.xlu0 %669
    %v671 = vsel %vm655, %v652, -inf
    %672 = vmax.xlane.f32.xlu0 %v671
    %v673 = vpop.xlane.xlu0 %672
    %v674 = vsel %vm655, %v653, -inf
    %675 = vmax.xlane.f32.xlu0 %v674
    %v676 = vpop.xlane.xlu0 %675
    %v677 = vsel %vm655, %v654, -inf
    %678 = vmax.xlane.f32.xlu0 %v677
    %v679 = vpop.xlane.xlu0 %678
    %v680 = vsub.f32 %v647, %v658
    %v681 = vsub.f32 %v648, %v661
    %v682 = vsub.f32 %v649, %v664
    %v683 = vsub.f32 %v650, %v667
    %v684 = vsub.f32 %v651, %v670
    %v685 = vsub.f32 %v652, %v673
    %v686 = vsub.f32 %v653, %v676
    %v687 = vsub.f32 %v654, %v679
    %v688 = vmul.f32 %v680, 1.442695
    %v689 = vpow.pop %v688
    %v690 = vmul.f32 %v681, 1.442695
    %v691 = vpow.pop %v690
    %v692 = vmul.f32 %v682, 1.442695
    %v693 = vpow.pop %v692
    %v694 = vmul.f32 %v683, 1.442695
    %v695 = vpow.pop %v694
    %v696 = vmul.f32 %v684, 1.442695
    %v697 = vpow.pop %v696
    %v698 = vmul.f32 %v685, 1.442695
    %v699 = vpow.pop %v698
    %v700 = vmul.f32 %v686, 1.442695
    %v701 = vpow.pop %v700
    %v702 = vmul.f32 %v687, 1.442695
    %v703 = vpow.pop %v702
    %v704 = vmul.f32 %v689, %v71
    %v705 = vmul.f32 %v691, %v72
    %v706 = vmul.f32 %v693, %v73
    %v707 = vmul.f32 %v695, %v74
    %v708 = vmul.f32 %v697, %v75
    %v709 = vmul.f32 %v699, %v76
    %v710 = vmul.f32 %v701, %v77
    %v711 = vmul.f32 %v703, %v78
    %v712 = vsel %vm655, %v704, 0.0
    %713 = vadd.xlane.f32.xlu0 %v712
    %v714 = vpop.xlane.xlu0 %713
    %v715 = vsel %vm655, %v705, 0.0
    %716 = vadd.xlane.f32.xlu0 %v715
    %v717 = vpop.xlane.xlu0 %716
    %v718 = vsel %vm655, %v706, 0.0
    %719 = vadd.xlane.f32.xlu0 %v718
    %v720 = vpop.xlane.xlu0 %719
    %v721 = vsel %vm655, %v707, 0.0
    %722 = vadd.xlane.f32.xlu0 %v721
    %v723 = vpop.xlane.xlu0 %722
    %v724 = vsel %vm655, %v708, 0.0
    %725 = vadd.xlane.f32.xlu0 %v724
    %v726 = vpop.xlane.xlu0 %725
    %v727 = vsel %vm655, %v709, 0.0
    %728 = vadd.xlane.f32.xlu0 %v727
    %v729 = vpop.xlane.xlu0 %728
    %v730 = vsel %vm655, %v710, 0.0
    %731 = vadd.xlane.f32.xlu0 %v730
    %v732 = vpop.xlane.xlu0 %731
    %v733 = vsel %vm655, %v711, 0.0
    %734 = vadd.xlane.f32.xlu0 %v733
    %v735 = vpop.xlane.xlu0 %734
    %v736 = vsel %vm655, %v689, 0.0
    %737 = vadd.xlane.f32.xlu0 %v736
    %v738 = vpop.xlane.xlu0 %737
    %v739 = vsel %vm655, %v691, 0.0
    %740 = vadd.xlane.f32.xlu0 %v739
    %v741 = vpop.xlane.xlu0 %740
    %v742 = vsel %vm655, %v693, 0.0
    %743 = vadd.xlane.f32.xlu0 %v742
    %v744 = vpop.xlane.xlu0 %743
    %v745 = vsel %vm655, %v695, 0.0
    %746 = vadd.xlane.f32.xlu0 %v745
    %v747 = vpop.xlane.xlu0 %746
    %v748 = vsel %vm655, %v697, 0.0
    %749 = vadd.xlane.f32.xlu0 %v748
    %v750 = vpop.xlane.xlu0 %749
    %v751 = vsel %vm655, %v699, 0.0
    %752 = vadd.xlane.f32.xlu0 %v751
    %v753 = vpop.xlane.xlu0 %752
    %v754 = vsel %vm655, %v701, 0.0
    %755 = vadd.xlane.f32.xlu0 %v754
    %v756 = vpop.xlane.xlu0 %755
    %v757 = vsel %vm655, %v703, 0.0
    %758 = vadd.xlane.f32.xlu0 %v757
    %v759 = vpop.xlane.xlu0 %758
    %v760 = vmul.f32 %v738, 1e-13
    %v761 = vmul.f32 %v741, 1e-13
    %v762 = vmul.f32 %v744, 1e-13
    %v763 = vmul.f32 %v747, 1e-13
    %v764 = vmul.f32 %v750, 1e-13
    %v765 = vmul.f32 %v753, 1e-13
    %v766 = vmul.f32 %v756, 1e-13
    %v767 = vmul.f32 %v759, 1e-13
    %v768 = vadd.f32 %v714, %v760
    %v769 = vadd.f32 %v717, %v761
    %v770 = vadd.f32 %v720, %v762
    %v771 = vadd.f32 %v723, %v763
    %v772 = vadd.f32 %v726, %v764
    %v773 = vadd.f32 %v729, %v765
    %v774 = vadd.f32 %v732, %v766
    %v775 = vadd.f32 %v735, %v767
    %v776 = vrcp.pop %v768
    %v777 = vrcp.pop %v769
    %v778 = vrcp.pop %v770
    %v779 = vrcp.pop %v771
    %v780 = vrcp.pop %v772
    %v781 = vrcp.pop %v773
    %v782 = vrcp.pop %v774
    %v783 = vrcp.pop %v775
    %v784 = vmul.f32 %v768, %v776
    %v785 = vmul.f32 %v769, %v777
    %v786 = vmul.f32 %v770, %v778
    %v787 = vmul.f32 %v771, %v779
    %v788 = vmul.f32 %v772, %v780
    %v789 = vmul.f32 %v773, %v781
    %v790 = vmul.f32 %v774, %v782
    %v791 = vmul.f32 %v775, %v783
    %v792 = vsub.f32 2.0, %v784
    %v793 = vsub.f32 2.0, %v785
    %v794 = vsub.f32 2.0, %v786
    %v795 = vsub.f32 2.0, %v787
    %v796 = vsub.f32 2.0, %v788
    %v797 = vsub.f32 2.0, %v789
    %v798 = vsub.f32 2.0, %v790
    %v799 = vsub.f32 2.0, %v791
    %v800 = vmul.f32 %v776, %v792
    %v801 = vmul.f32 %v777, %v793
    %v802 = vmul.f32 %v778, %v794
    %v803 = vmul.f32 %v779, %v795
    %v804 = vmul.f32 %v780, %v796
    %v805 = vmul.f32 %v781, %v797
    %v806 = vmul.f32 %v782, %v798
    %v807 = vmul.f32 %v783, %v799
    %v808 = vmul.f32 %v704, %v800
    %v809 = vmul.f32 %v705, %v801
    %v810 = vmul.f32 %v706, %v802
    %v811 = vmul.f32 %v707, %v803
    %v812 = vmul.f32 %v708, %v804
    %v813 = vmul.f32 %v709, %v805
    %v814 = vmul.f32 %v710, %v806
    %v815 = vmul.f32 %v711, %v807
    %vm816 = vcmask 130048
    %v818 = vsel %vm816, %v808, 0
    %820 = vmatprep.subr.mxu0 0.0
    %821 = vmatpush1.msra.mxu0 %v54
    %822 = vmatprep.subr.mxu0 0.0
    %823 = vmatpush1.msra.mxu0 %v55
    %824 = vmatprep.subr.mxu0 0.0
    %825 = vmatpush1.msra.mxu0 0.0
    %826 = vmatprep.subr.mxu0 0.0
    %827 = vmatpush1.msra.mxu0 0.0
    %828 = vmatprep.subr.mxu0 0.0
    %829 = vmatpush1.msra.mxu0 0.0
    %830 = vmatprep.subr.mxu0 0.0
    %831 = vmatpush1.msra.mxu0 0.0
    %832 = vmatprep.subr.mxu0 0.0
    %833 = vmatpush1.msra.mxu0 0.0
    %834 = vmatprep.subr.mxu0 0.0
    %835 = vmatpush1.msra.mxu0 0.0
    %836 = vmatprep.subr.mxu0 0.0
    %837 = vmatpush1.msra.mxu0 0.0
    %838 = vmatprep.subr.mxu0 0.0
    %839 = vmatpush1.msra.mxu0 0.0
    %840 = vmatprep.subr.mxu0 0.0
    %841 = vmatpush1.msra.mxu0 0.0
    %842 = vmatprep.subr.mxu0 0.0
    %843 = vmatpush1.msra.mxu0 0.0
    %844 = vmatprep.subr.mxu0 0.0
    %845 = vmatpush1.msra.mxu0 0.0
    %846 = vmatprep.subr.mxu0 0.0
    %847 = vmatpush1.msra.mxu0 0.0
    %848 = vmatprep.subr.mxu0 0.0
    %849 = vmatpush1.msra.mxu0 0.0
    %850 = vmatprep.subr.mxu0 0.0
    %851 = vmatpush1.msra.mxu0 0.0
    %852 = vmatprep.subr.mxu0 0.0
    %853 = vmatpush1.msra.mxu0 0.0
    %854 = vmatprep.subr.mxu0 0.0
    %855 = vmatpush1.msra.mxu0 0.0
    %856 = vmatprep.subr.mxu0 0.0
    %857 = vmatpush1.msra.mxu0 0.0
    %858 = vmatprep.subr.mxu0 0.0
    %859 = vmatpush1.msra.mxu0 0.0
    %860 = vmatprep.subr.mxu0 0.0
    %861 = vmatpush1.msra.mxu0 0.0
    %862 = vmatprep.subr.mxu0 0.0
    %863 = vmatpush1.msra.mxu0 0.0
    %864 = vmatprep.subr.mxu0 0.0
    %865 = vmatpush1.msra.mxu0 0.0
    %866 = vmatprep.subr.mxu0 0.0
    %867 = vmatpush1.msra.mxu0 0.0
    %868 = vmatprep.subr.mxu0 0.0
    %869 = vmatpush1.msra.mxu0 0.0
    %870 = vmatprep.subr.mxu0 0.0
    %871 = vmatpush1.msra.mxu0 0.0
    %872 = vmatprep.subr.mxu0 0.0
    %873 = vmatpush1.msra.mxu0 0.0
    %874 = vmatprep.subr.mxu0 0.0
    %875 = vmatpush1.msra.mxu0 0.0
    %876 = vmatprep.subr.mxu0 0.0
    %877 = vmatpush1.msra.mxu0 0.0
    %878 = vmatprep.subr.mxu0 0.0
    %879 = vmatpush1.msra.mxu0 0.0
    %880 = vmatprep.subr.mxu0 0.0
    %881 = vmatpush1.msra.mxu0 0.0
    %882 = vmatprep.subr.mxu0 0.0
    %883 = vmatpush1.msra.mxu0 0.0
    %884 = vmatprep.mubr.f32.mxu0 0.0
    %885 = vmatmul.mubr.f32.gmra.mrb[0].mxu0 %v818
    %v886 = vpop.f32.mrb[0].mxu0
    %v887 = vadd.f32 0.0, %v886
    %v888 = vpop.f32.mrb[0].mxu0
    %889 = vdwg.mxu0
    %v891 = vsel %vm816, %v809, 0
    %893 = vmatprep.subr.mxu0 0.0
    %894 = vmatpush1.msra.mxu0 %v56
    %895 = vmatprep.subr.mxu0 0.0
    %896 = vmatpush1.msra.mxu0 %v57
    %897 = vmatprep.subr.mxu0 0.0
    %898 = vmatpush1.msra.mxu0 0.0
    %899 = vmatprep.subr.mxu0 0.0
    %900 = vmatpush1.msra.mxu0 0.0
    %901 = vmatprep.subr.mxu0 0.0
    %902 = vmatpush1.msra.mxu0 0.0
    %903 = vmatprep.subr.mxu0 0.0
    %904 = vmatpush1.msra.mxu0 0.0
    %905 = vmatprep.subr.mxu0 0.0
    %906 = vmatpush1.msra.mxu0 0.0
    %907 = vmatprep.subr.mxu0 0.0
    %908 = vmatpush1.msra.mxu0 0.0
    %909 = vmatprep.subr.mxu0 0.0
    %910 = vmatpush1.msra.mxu0 0.0
    %911 = vmatprep.subr.mxu0 0.0
    %912 = vmatpush1.msra.mxu0 0.0
    %913 = vmatprep.subr.mxu0 0.0
    %914 = vmatpush1.msra.mxu0 0.0
    %915 = vmatprep.subr.mxu0 0.0
    %916 = vmatpush1.msra.mxu0 0.0
    %917 = vmatprep.subr.mxu0 0.0
    %918 = vmatpush1.msra.mxu0 0.0
    %919 = vmatprep.subr.mxu0 0.0
    %920 = vmatpush1.msra.mxu0 0.0
    %921 = vmatprep.subr.mxu0 0.0
    %922 = vmatpush1.msra.mxu0 0.0
    %923 = vmatprep.subr.mxu0 0.0
    %924 = vmatpush1.msra.mxu0 0.0
    %925 = vmatprep.subr.mxu0 0.0
    %926 = vmatpush1.msra.mxu0 0.0
    %927 = vmatprep.subr.mxu0 0.0
    %928 = vmatpush1.msra.mxu0 0.0
    %929 = vmatprep.subr.mxu0 0.0
    %930 = vmatpush1.msra.mxu0 0.0
    %931 = vmatprep.subr.mxu0 0.0
    %932 = vmatpush1.msra.mxu0 0.0
    %933 = vmatprep.subr.mxu0 0.0
    %934 = vmatpush1.msra.mxu0 0.0
    %935 = vmatprep.subr.mxu0 0.0
    %936 = vmatpush1.msra.mxu0 0.0
    %937 = vmatprep.subr.mxu0 0.0
    %938 = vmatpush1.msra.mxu0 0.0
    %939 = vmatprep.subr.mxu0 0.0
    %940 = vmatpush1.msra.mxu0 0.0
    %941 = vmatprep.subr.mxu0 0.0
    %942 = vmatpush1.msra.mxu0 0.0
    %943 = vmatprep.subr.mxu0 0.0
    %944 = vmatpush1.msra.mxu0 0.0
    %945 = vmatprep.subr.mxu0 0.0
    %946 = vmatpush1.msra.mxu0 0.0
    %947 = vmatprep.subr.mxu0 0.0
    %948 = vmatpush1.msra.mxu0 0.0
    %949 = vmatprep.subr.mxu0 0.0
    %950 = vmatpush1.msra.mxu0 0.0
    %951 = vmatprep.subr.mxu0 0.0
    %952 = vmatpush1.msra.mxu0 0.0
    %953 = vmatprep.subr.mxu0 0.0
    %954 = vmatpush1.msra.mxu0 0.0
    %955 = vmatprep.subr.mxu0 0.0
    %956 = vmatpush1.msra.mxu0 0.0
    %957 = vmatprep.mubr.f32.mxu0 0.0
    %958 = vmatmul.mubr.f32.gmra.mrb[0].mxu0 %v891
    %v959 = vpop.f32.mrb[0].mxu0
    %v960 = vadd.f32 0.0, %v959
    %v961 = vpop.f32.mrb[0].mxu0
    %962 = vdwg.mxu0
    %v964 = vsel %vm816, %v810, 0
    %966 = vmatprep.subr.mxu0 0.0
    %967 = vmatpush1.msra.mxu0 %v58
    %968 = vmatprep.subr.mxu0 0.0
    %969 = vmatpush1.msra.mxu0 %v59
    %970 = vmatprep.subr.mxu0 0.0
    %971 = vmatpush1.msra.mxu0 0.0
    %972 = vmatprep.subr.mxu0 0.0
    %973 = vmatpush1.msra.mxu0 0.0
    %974 = vmatprep.subr.mxu0 0.0
    %975 = vmatpush1.msra.mxu0 0.0
    %976 = vmatprep.subr.mxu0 0.0
    %977 = vmatpush1.msra.mxu0 0.0
    %978 = vmatprep.subr.mxu0 0.0
    %979 = vmatpush1.msra.mxu0 0.0
    %980 = vmatprep.subr.mxu0 0.0
    %981 = vmatpush1.msra.mxu0 0.0
    %982 = vmatprep.subr.mxu0 0.0
    %983 = vmatpush1.msra.mxu0 0.0
    %984 = vmatprep.subr.mxu0 0.0
    %985 = vmatpush1.msra.mxu0 0.0
    %986 = vmatprep.subr.mxu0 0.0
    %987 = vmatpush1.msra.mxu0 0.0
    %988 = vmatprep.subr.mxu0 0.0
    %989 = vmatpush1.msra.mxu0 0.0
    %990 = vmatprep.subr.mxu0 0.0
    %991 = vmatpush1.msra.mxu0 0.0
    %992 = vmatprep.subr.mxu0 0.0
    %993 = vmatpush1.msra.mxu0 0.0
    %994 = vmatprep.subr.mxu0 0.0
    %995 = vmatpush1.msra.mxu0 0.0
    %996 = vmatprep.subr.mxu0 0.0
    %997 = vmatpush1.msra.mxu0 0.0
    %998 = vmatprep.subr.mxu0 0.0
    %999 = vmatpush1.msra.mxu0 0.0
    %1000 = vmatprep.subr.mxu0 0.0
    %1001 = vmatpush1.msra.mxu0 0.0
    %1002 = vmatprep.subr.mxu0 0.0
    %1003 = vmatpush1.msra.mxu0 0.0
    %1004 = vmatprep.subr.mxu0 0.0
    %1005 = vmatpush1.msra.mxu0 0.0
    %1006 = vmatprep.subr.mxu0 0.0
    %1007 = vmatpush1.msra.mxu0 0.0
    %1008 = vmatprep.subr.mxu0 0.0
    %1009 = vmatpush1.msra.mxu0 0.0
    %1010 = vmatprep.subr.mxu0 0.0
    %1011 = vmatpush1.msra.mxu0 0.0
    %1012 = vmatprep.subr.mxu0 0.0
    %1013 = vmatpush1.msra.mxu0 0.0
    %1014 = vmatprep.subr.mxu0 0.0
    %1015 = vmatpush1.msra.mxu0 0.0
    %1016 = vmatprep.subr.mxu0 0.0
    %1017 = vmatpush1.msra.mxu0 0.0
    %1018 = vmatprep.subr.mxu0 0.0
    %1019 = vmatpush1.msra.mxu0 0.0
    %1020 = vmatprep.subr.mxu0 0.0
    %1021 = vmatpush1.msra.mxu0 0.0
    %1022 = vmatprep.subr.mxu0 0.0
    %1023 = vmatpush1.msra.mxu0 0.0
    %1024 = vmatprep.subr.mxu0 0.0
    %1025 = vmatpush1.msra.mxu0 0.0
    %1026 = vmatprep.subr.mxu0 0.0
    %1027 = vmatpush1.msra.mxu0 0.0
    %1028 = vmatprep.subr.mxu0 0.0
    %1029 = vmatpush1.msra.mxu0 0.0
    %1030 = vmatprep.mubr.f32.mxu0 0.0
    %1031 = vmatmul.mubr.f32.gmra.mrb[0].mxu0 %v964
    %v1032 = vpop.f32.mrb[0].mxu0
    %v1033 = vadd.f32 0.0, %v1032
    %v1034 = vpop.f32.mrb[0].mxu0
    %1035 = vdwg.mxu0
    %v1037 = vsel %vm816, %v811, 0
    %1039 = vmatprep.subr.mxu0 0.0
    %1040 = vmatpush1.msra.mxu0 %v60
    %1041 = vmatprep.subr.mxu0 0.0
    %1042 = vmatpush1.msra.mxu0 %v61
    %1043 = vmatprep.subr.mxu0 0.0
    %1044 = vmatpush1.msra.mxu0 0.0
    %1045 = vmatprep.subr.mxu0 0.0
    %1046 = vmatpush1.msra.mxu0 0.0
    %1047 = vmatprep.subr.mxu0 0.0
    %1048 = vmatpush1.msra.mxu0 0.0
    %1049 = vmatprep.subr.mxu0 0.0
    %1050 = vmatpush1.msra.mxu0 0.0
    %1051 = vmatprep.subr.mxu0 0.0
    %1052 = vmatpush1.msra.mxu0 0.0
    %1053 = vmatprep.subr.mxu0 0.0
    %1054 = vmatpush1.msra.mxu0 0.0
    %1055 = vmatprep.subr.mxu0 0.0
    %1056 = vmatpush1.msra.mxu0 0.0
    %1057 = vmatprep.subr.mxu0 0.0
    %1058 = vmatpush1.msra.mxu0 0.0
    %1059 = vmatprep.subr.mxu0 0.0
    %1060 = vmatpush1.msra.mxu0 0.0
    %1061 = vmatprep.subr.mxu0 0.0
    %1062 = vmatpush1.msra.mxu0 0.0
    %1063 = vmatprep.subr.mxu0 0.0
    %1064 = vmatpush1.msra.mxu0 0.0
    %1065 = vmatprep.subr.mxu0 0.0
    %1066 = vmatpush1.msra.mxu0 0.0
    %1067 = vmatprep.subr.mxu0 0.0
    %1068 = vmatpush1.msra.mxu0 0.0
    %1069 = vmatprep.subr.mxu0 0.0
    %1070 = vmatpush1.msra.mxu0 0.0
    %1071 = vmatprep.subr.mxu0 0.0
    %1072 = vmatpush1.msra.mxu0 0.0
    %1073 = vmatprep.subr.mxu0 0.0
    %1074 = vmatpush1.msra.mxu0 0.0
    %1075 = vmatprep.subr.mxu0 0.0
    %1076 = vmatpush1.msra.mxu0 0.0
    %1077 = vmatprep.subr.mxu0 0.0
    %1078 = vmatpush1.msra.mxu0 0.0
    %1079 = vmatprep.subr.mxu0 0.0
    %1080 = vmatpush1.msra.mxu0 0.0
    %1081 = vmatprep.subr.mxu0 0.0
    %1082 = vmatpush1.msra.mxu0 0.0
    %1083 = vmatprep.subr.mxu0 0.0
    %1084 = vmatpush1.msra.mxu0 0.0
    %1085 = vmatprep.subr.mxu0 0.0
    %1086 = vmatpush1.msra.mxu0 0.0
    %1087 = vmatprep.subr.mxu0 0.0
    %1088 = vmatpush1.msra.mxu0 0.0
    %1089 = vmatprep.subr.mxu0 0.0
    %1090 = vmatpush1.msra.mxu0 0.0
    %1091 = vmatprep.subr.mxu0 0.0
    %1092 = vmatpush1.msra.mxu0 0.0
    %1093 = vmatprep.subr.mxu0 0.0
    %1094 = vmatpush1.msra.mxu0 0.0
    %1095 = vmatprep.subr.mxu0 0.0
    %1096 = vmatpush1.msra.mxu0 0.0
    %1097 = vmatprep.subr.mxu0 0.0
    %1098 = vmatpush1.msra.mxu0 0.0
    %1099 = vmatprep.subr.mxu0 0.0
    %1100 = vmatpush1.msra.mxu0 0.0
    %1101 = vmatprep.subr.mxu0 0.0
    %1102 = vmatpush1.msra.mxu0 0.0
    %1103 = vmatprep.mubr.f32.mxu0 0.0
    %1104 = vmatmul.mubr.f32.gmra.mrb[0].mxu0 %v1037
    %v1105 = vpop.f32.mrb[0].mxu0
    %v1106 = vadd.f32 0.0, %v1105
    %v1107 = vpop.f32.mrb[0].mxu0
    %1108 = vdwg.mxu0
    %v1110 = vsel %vm816, %v812, 0
    %1112 = vmatprep.subr.mxu0 0.0
    %1113 = vmatpush1.msra.mxu0 %v62
    %1114 = vmatprep.subr.mxu0 0.0
    %1115 = vmatpush1.msra.mxu0 %v63
    %1116 = vmatprep.subr.mxu0 0.0
    %1117 = vmatpush1.msra.mxu0 0.0
    %1118 = vmatprep.subr.mxu0 0.0
    %1119 = vmatpush1.msra.mxu0 0.0
    %1120 = vmatprep.subr.mxu0 0.0
    %1121 = vmatpush1.msra.mxu0 0.0
    %1122 = vmatprep.subr.mxu0 0.0
    %1123 = vmatpush1.msra.mxu0 0.0
    %1124 = vmatprep.subr.mxu0 0.0
    %1125 = vmatpush1.msra.mxu0 0.0
    %1126 = vmatprep.subr.mxu0 0.0
    %1127 = vmatpush1.msra.mxu0 0.0
    %1128 = vmatprep.subr.mxu0 0.0
    %1129 = vmatpush1.msra.mxu0 0.0
    %1130 = vmatprep.subr.mxu0 0.0
    %1131 = vmatpush1.msra.mxu0 0.0
    %1132 = vmatprep.subr.mxu0 0.0
    %1133 = vmatpush1.msra.mxu0 0.0
    %1134 = vmatprep.subr.mxu0 0.0
    %1135 = vmatpush1.msra.mxu0 0.0
    %1136 = vmatprep.subr.mxu0 0.0
    %1137 = vmatpush1.msra.mxu0 0.0
    %1138 = vmatprep.subr.mxu0 0.0
    %1139 = vmatpush1.msra.mxu0 0.0
    %1140 = vmatprep.subr.mxu0 0.0
    %1141 = vmatpush1.msra.mxu0 0.0
    %1142 = vmatprep.subr.mxu0 0.0
    %1143 = vmatpush1.msra.mxu0 0.0
    %1144 = vmatprep.subr.mxu0 0.0
    %1145 = vmatpush1.msra.mxu0 0.0
    %1146 = vmatprep.subr.mxu0 0.0
    %1147 = vmatpush1.msra.mxu0 0.0
    %1148 = vmatprep.subr.mxu0 0.0
    %1149 = vmatpush1.msra.mxu0 0.0
    %1150 = vmatprep.subr.mxu0 0.0
    %1151 = vmatpush1.msra.mxu0 0.0
    %1152 = vmatprep.subr.mxu0 0.0
    %1153 = vmatpush1.msra.mxu0 0.0
    %1154 = vmatprep.subr.mxu0 0.0
    %1155 = vmatpush1.msra.mxu0 0.0
    %1156 = vmatprep.subr.mxu0 0.0
    %1157 = vmatpush1.msra.mxu0 0.0
    %1158 = vmatprep.subr.mxu0 0.0
    %1159 = vmatpush1.msra.mxu0 0.0
    %1160 = vmatprep.subr.mxu0 0.0
    %1161 = vmatpush1.msra.mxu0 0.0
    %1162 = vmatprep.subr.mxu0 0.0
    %1163 = vmatpush1.msra.mxu0 0.0
    %1164 = vmatprep.subr.mxu0 0.0
    %1165 = vmatpush1.msra.mxu0 0.0
    %1166 = vmatprep.subr.mxu0 0.0
    %1167 = vmatpush1.msra.mxu0 0.0
    %1168 = vmatprep.subr.mxu0 0.0
    %1169 = vmatpush1.msra.mxu0 0.0
    %1170 = vmatprep.subr.mxu0 0.0
    %1171 = vmatpush1.msra.mxu0 0.0
    %1172 = vmatprep.subr.mxu0 0.0
    %1173 = vmatpush1.msra.mxu0 0.0
    %1174 = vmatprep.subr.mxu0 0.0
    %1175 = vmatpush1.msra.mxu0 0.0
    %1176 = vmatprep.mubr.f32.mxu0 0.0
    %1177 = vmatmul.mubr.f32.gmra.mrb[0].mxu0 %v1110
    %v1178 = vpop.f32.mrb[0].mxu0
    %v1179 = vadd.f32 0.0, %v1178
    %v1180 = vpop.f32.mrb[0].mxu0
    %1181 = vdwg.mxu0
    %v1183 = vsel %vm816, %v813, 0
    %1185 = vmatprep.subr.mxu0 0.0
    %1186 = vmatpush1.msra.mxu0 %v64
    %1187 = vmatprep.subr.mxu0 0.0
    %1188 = vmatpush1.msra.mxu0 %v65
    %1189 = vmatprep.subr.mxu0 0.0
    %1190 = vmatpush1.msra.mxu0 0.0
    %1191 = vmatprep.subr.mxu0 0.0
    %1192 = vmatpush1.msra.mxu0 0.0
    %1193 = vmatprep.subr.mxu0 0.0
    %1194 = vmatpush1.msra.mxu0 0.0
    %1195 = vmatprep.subr.mxu0 0.0
    %1196 = vmatpush1.msra.mxu0 0.0
    %1197 = vmatprep.subr.mxu0 0.0
    %1198 = vmatpush1.msra.mxu0 0.0
    %1199 = vmatprep.subr.mxu0 0.0
    %1200 = vmatpush1.msra.mxu0 0.0
    %1201 = vmatprep.subr.mxu0 0.0
    %1202 = vmatpush1.msra.mxu0 0.0
    %1203 = vmatprep.subr.mxu0 0.0
    %1204 = vmatpush1.msra.mxu0 0.0
    %1205 = vmatprep.subr.mxu0 0.0
    %1206 = vmatpush1.msra.mxu0 0.0
    %1207 = vmatprep.subr.mxu0 0.0
    %1208 = vmatpush1.msra.mxu0 0.0
    %1209 = vmatprep.subr.mxu0 0.0
    %1210 = vmatpush1.msra.mxu0 0.0
    %1211 = vmatprep.subr.mxu0 0.0
    %1212 = vmatpush1.msra.mxu0 0.0
    %1213 = vmatprep.subr.mxu0 0.0
    %1214 = vmatpush1.msra.mxu0 0.0
    %1215 = vmatprep.subr.mxu0 0.0
    %1216 = vmatpush1.msra.mxu0 0.0
    %1217 = vmatprep.subr.mxu0 0.0
    %1218 = vmatpush1.msra.mxu0 0.0
    %1219 = vmatprep.subr.mxu0 0.0
    %1220 = vmatpush1.msra.mxu0 0.0
    %1221 = vmatprep.subr.mxu0 0.0
    %1222 = vmatpush1.msra.mxu0 0.0
    %1223 = vmatprep.subr.mxu0 0.0
    %1224 = vmatpush1.msra.mxu0 0.0
    %1225 = vmatprep.subr.mxu0 0.0
    %1226 = vmatpush1.msra.mxu0 0.0
    %1227 = vmatprep.subr.mxu0 0.0
    %1228 = vmatpush1.msra.mxu0 0.0
    %1229 = vmatprep.subr.mxu0 0.0
    %1230 = vmatpush1.msra.mxu0 0.0
    %1231 = vmatprep.subr.mxu0 0.0
    %1232 = vmatpush1.msra.mxu0 0.0
    %1233 = vmatprep.subr.mxu0 0.0
    %1234 = vmatpush1.msra.mxu0 0.0
    %1235 = vmatprep.subr.mxu0 0.0
    %1236 = vmatpush1.msra.mxu0 0.0
    %1237 = vmatprep.subr.mxu0 0.0
    %1238 = vmatpush1.msra.mxu0 0.0
    %1239 = vmatprep.subr.mxu0 0.0
    %1240 = vmatpush1.msra.mxu0 0.0
    %1241 = vmatprep.subr.mxu0 0.0
    %1242 = vmatpush1.msra.mxu0 0.0
    %1243 = vmatprep.subr.mxu0 0.0
    %1244 = vmatpush1.msra.mxu0 0.0
    %1245 = vmatprep.subr.mxu0 0.0
    %1246 = vmatpush1.msra.mxu0 0.0
    %1247 = vmatprep.subr.mxu0 0.0
    %1248 = vmatpush1.msra.mxu0 0.0
    %1249 = vmatprep.mubr.f32.mxu0 0.0
    %1250 = vmatmul.mubr.f32.gmra.mrb[0].mxu0 %v1183
    %v1251 = vpop.f32.mrb[0].mxu0
    %v1252 = vadd.f32 0.0, %v1251
    %v1253 = vpop.f32.mrb[0].mxu0
    %1254 = vdwg.mxu0
    %v1256 = vsel %vm816, %v814, 0
    %1258 = vmatprep.subr.mxu0 0.0
    %1259 = vmatpush1.msra.mxu0 %v66
    %1260 = vmatprep.subr.mxu0 0.0
    %1261 = vmatpush1.msra.mxu0 %v67
    %1262 = vmatprep.subr.mxu0 0.0
    %1263 = vmatpush1.msra.mxu0 0.0
    %1264 = vmatprep.subr.mxu0 0.0
    %1265 = vmatpush1.msra.mxu0 0.0
    %1266 = vmatprep.subr.mxu0 0.0
    %1267 = vmatpush1.msra.mxu0 0.0
    %1268 = vmatprep.subr.mxu0 0.0
    %1269 = vmatpush1.msra.mxu0 0.0
    %1270 = vmatprep.subr.mxu0 0.0
    %1271 = vmatpush1.msra.mxu0 0.0
    %1272 = vmatprep.subr.mxu0 0.0
    %1273 = vmatpush1.msra.mxu0 0.0
    %1274 = vmatprep.subr.mxu0 0.0
    %1275 = vmatpush1.msra.mxu0 0.0
    %1276 = vmatprep.subr.mxu0 0.0
    %1277 = vmatpush1.msra.mxu0 0.0
    %1278 = vmatprep.subr.mxu0 0.0
    %1279 = vmatpush1.msra.mxu0 0.0
    %1280 = vmatprep.subr.mxu0 0.0
    %1281 = vmatpush1.msra.mxu0 0.0
    %1282 = vmatprep.subr.mxu0 0.0
    %1283 = vmatpush1.msra.mxu0 0.0
    %1284 = vmatprep.subr.mxu0 0.0
    %1285 = vmatpush1.msra.mxu0 0.0
    %1286 = vmatprep.subr.mxu0 0.0
    %1287 = vmatpush1.msra.mxu0 0.0
    %1288 = vmatprep.subr.mxu0 0.0
    %1289 = vmatpush1.msra.mxu0 0.0
    %1290 = vmatprep.subr.mxu0 0.0
    %1291 = vmatpush1.msra.mxu0 0.0
    %1292 = vmatprep.subr.mxu0 0.0
    %1293 = vmatpush1.msra.mxu0 0.0
    %1294 = vmatprep.subr.mxu0 0.0
    %1295 = vmatpush1.msra.mxu0 0.0
    %1296 = vmatprep.subr.mxu0 0.0
    %1297 = vmatpush1.msra.mxu0 0.0
    %1298 = vmatprep.subr.mxu0 0.0
    %1299 = vmatpush1.msra.mxu0 0.0
    %1300 = vmatprep.subr.mxu0 0.0
    %1301 = vmatpush1.msra.mxu0 0.0
    %1302 = vmatprep.subr.mxu0 0.0
    %1303 = vmatpush1.msra.mxu0 0.0
    %1304 = vmatprep.subr.mxu0 0.0
    %1305 = vmatpush1.msra.mxu0 0.0
    %1306 = vmatprep.subr.mxu0 0.0
    %1307 = vmatpush1.msra.mxu0 0.0
    %1308 = vmatprep.subr.mxu0 0.0
    %1309 = vmatpush1.msra.mxu0 0.0
    %1310 = vmatprep.subr.mxu0 0.0
    %1311 = vmatpush1.msra.mxu0 0.0
    %1312 = vmatprep.subr.mxu0 0.0
    %1313 = vmatpush1.msra.mxu0 0.0
    %1314 = vmatprep.subr.mxu0 0.0
    %1315 = vmatpush1.msra.mxu0 0.0
    %1316 = vmatprep.subr.mxu0 0.0
    %1317 = vmatpush1.msra.mxu0 0.0
    %1318 = vmatprep.subr.mxu0 0.0
    %1319 = vmatpush1.msra.mxu0 0.0
    %1320 = vmatprep.subr.mxu0 0.0
    %1321 = vmatpush1.msra.mxu0 0.0
    %1322 = vmatprep.mubr.f32.mxu0 0.0
    %1323 = vmatmul.mubr.f32.gmra.mrb[0].mxu0 %v1256
    %v1324 = vpop.f32.mrb[0].mxu0
    %v1325 = vadd.f32 0.0, %v1324
    %v1326 = vpop.f32.mrb[0].mxu0
    %1327 = vdwg.mxu0
    %v1329 = vsel %vm816, %v815, 0
    %1331 = vmatprep.subr.mxu0 0.0
    %1332 = vmatpush1.msra.mxu0 %v68
    %1333 = vmatprep.subr.mxu0 0.0
    %1334 = vmatpush1.msra.mxu0 %v69
    %1335 = vmatprep.subr.mxu0 0.0
    %1336 = vmatpush1.msra.mxu0 0.0
    %1337 = vmatprep.subr.mxu0 0.0
    %1338 = vmatpush1.msra.mxu0 0.0
    %1339 = vmatprep.subr.mxu0 0.0
    %1340 = vmatpush1.msra.mxu0 0.0
    %1341 = vmatprep.subr.mxu0 0.0
    %1342 = vmatpush1.msra.mxu0 0.0
    %1343 = vmatprep.subr.mxu0 0.0
    %1344 = vmatpush1.msra.mxu0 0.0
    %1345 = vmatprep.subr.mxu0 0.0
    %1346 = vmatpush1.msra.mxu0 0.0
    %1347 = vmatprep.subr.mxu0 0.0
    %1348 = vmatpush1.msra.mxu0 0.0
    %1349 = vmatprep.subr.mxu0 0.0
    %1350 = vmatpush1.msra.mxu0 0.0
    %1351 = vmatprep.subr.mxu0 0.0
    %1352 = vmatpush1.msra.mxu0 0.0
    %1353 = vmatprep.subr.mxu0 0.0
    %1354 = vmatpush1.msra.mxu0 0.0
    %1355 = vmatprep.subr.mxu0 0.0
    %1356 = vmatpush1.msra.mxu0 0.0
    %1357 = vmatprep.subr.mxu0 0.0
    %1358 = vmatpush1.msra.mxu0 0.0
    %1359 = vmatprep.subr.mxu0 0.0
    %1360 = vmatpush1.msra.mxu0 0.0
    %1361 = vmatprep.subr.mxu0 0.0
    %1362 = vmatpush1.msra.mxu0 0.0
    %1363 = vmatprep.subr.mxu0 0.0
    %1364 = vmatpush1.msra.mxu0 0.0
    %1365 = vmatprep.subr.mxu0 0.0
    %1366 = vmatpush1.msra.mxu0 0.0
    %1367 = vmatprep.subr.mxu0 0.0
    %1368 = vmatpush1.msra.mxu0 0.0
    %1369 = vmatprep.subr.mxu0 0.0
    %1370 = vmatpush1.msra.mxu0 0.0
    %1371 = vmatprep.subr.mxu0 0.0
    %1372 = vmatpush1.msra.mxu0 0.0
    %1373 = vmatprep.subr.mxu0 0.0
    %1374 = vmatpush1.msra.mxu0 0.0
    %1375 = vmatprep.subr.mxu0 0.0
    %1376 = vmatpush1.msra.mxu0 0.0
    %1377 = vmatprep.subr.mxu0 0.0
    %1378 = vmatpush1.msra.mxu0 0.0
    %1379 = vmatprep.subr.mxu0 0.0
    %1380 = vmatpush1.msra.mxu0 0.0
    %1381 = vmatprep.subr.mxu0 0.0
    %1382 = vmatpush1.msra.mxu0 0.0
    %1383 = vmatprep.subr.mxu0 0.0
    %1384 = vmatpush1.msra.mxu0 0.0
    %1385 = vmatprep.subr.mxu0 0.0
    %1386 = vmatpush1.msra.mxu0 0.0
    %1387 = vmatprep.subr.mxu0 0.0
    %1388 = vmatpush1.msra.mxu0 0.0
    %1389 = vmatprep.subr.mxu0 0.0
    %1390 = vmatpush1.msra.mxu0 0.0
    %1391 = vmatprep.subr.mxu0 0.0
    %1392 = vmatpush1.msra.mxu0 0.0
    %1393 = vmatprep.subr.mxu0 0.0
    %1394 = vmatpush1.msra.mxu0 0.0
    %1395 = vmatprep.mubr.f32.mxu0 0.0
    %1396 = vmatmul.mubr.f32.gmra.mrb[0].mxu0 %v1329
    %v1397 = vpop.f32.mrb[0].mxu0
    %v1398 = vadd.f32 0.0, %v1397
    %v1399 = vpop.f32.mrb[0].mxu0
    %1400 = vdwg.mxu0
    %v1409 = vrot.slane %v960, 7
    %vm1410 = vcmask 1041409
    %v1411 = vsel %vm1410, %v1409, %v887
    %v1412 = vrot.slane %v1033, 6
    %vm1413 = vcmask 1042434
    %v1414 = vsel %vm1413, %v1412, %v1411
    %v1415 = vrot.slane %v1106, 5
    %vm1416 = vcmask 1043459
    %v1417 = vsel %vm1416, %v1415, %v1414
    %v1418 = vrot.slane %v1179, 4
    %vm1419 = vcmask 1044484
    %v1420 = vsel %vm1419, %v1418, %v1417
    %v1421 = vrot.slane %v1252, 3
    %vm1422 = vcmask 1045509
    %v1423 = vsel %vm1422, %v1421, %v1420
    %v1424 = vrot.slane %v1325, 2
    %vm1425 = vcmask 1046534
    %v1426 = vsel %vm1425, %v1424, %v1423
    %v1427 = vrot.slane %v1398, 1
    %vm1428 = vcmask 1047559
    %v1429 = vsel %vm1428, %v1427, %v1426
    %1431 = vst [vmem:[#allocation8] sm:$0xff] %v1429
    // Predicated region
    $region26: #{tpu_custom_call.1} parent=1 // pred_check
      _
    $region27: #{tpu_custom_call.1} parent=1 // pred_check_branch
      %1433 = sbr.rel (0) target = $region29
    $region28: #{tpu_custom_call.1} parent=1 // pred_region
      %s1435 = ssub.s32 128, 128
      %1436 = vsyncadd [#allocation4], %s1435
      %s1438 = sshll.u32 [#allocation8], 4
      %s1439 = int_to_ptr.vmem [resolvable:$true] %s1438
      %1441 = dma.vmem_to_hbm [thread:$0]  %s1439, 128, %s3, [#allocation4]
    $region29: #{tpu_custom_call.1} parent=1 // pred_fallthru
      _
    // Predicated region
    $region30: #{tpu_custom_call.1} parent=1 // pred_check
      _
    $region31: #{tpu_custom_call.1} parent=1 // pred_check_branch
      %1443 = sbr.rel (0) target = $region33
    $region32: #{tpu_custom_call.1} parent=1 // pred_region
      %1444 = dma.done [#allocation4], 128
    $region33: #{tpu_custom_call.1} parent=1 // pred_fallthru
      _
    %1445 = vsyncpa [#allocation3], 1
    %1446 = vsyncpa [#allocation6], 1
    %1447 = vsyncpa [#allocation4], 1

</llo_original>
